<compile_context>
chip_gen: v7x
topology: tpu7x:2x2x1
jax: 0.10.0
libtpu: 0.0.40
codegen_flags: <defaults>
</compile_context>

<pallas_src>
import functools

import jax
import jax.numpy as jnp
from jax import lax
from jax.experimental import pallas as pl
from jax.experimental.pallas import tpu as pltpu

BN_EPS = 1e-5


def conv_stats_kernel(x_ref, w_ref, b_ref, conv_ref, stats_ref, pad_ref):
    """Per-sample 3x3 conv as a single im2col matmul + partial BN statistics.

    x_ref    : (1, H, W, Cin)       VMEM  one sample (NHWC)
    w_ref    : (9*Cin, Cp)          VMEM  packed taps, Cout zero-padded to Cp (lane-dense)
    b_ref    : (1, Cp)              VMEM  conv bias (zero-padded)
    conv_ref : (H*W, Cp)            VMEM  conv output slab for this sample
    stats_ref: (1, 2, Cp)           VMEM  row0 = sum, row1 = sum of squares
    pad_ref  : (H+2, W+2, Cin) f32  VMEM scratch, zero halo built in-kernel
    """
    _, H, W, Cin = x_ref.shape
    HW = H * W

    # Zero-padded input built in VMEM (replaces the wrapper-side jnp.pad HBM round trip).
    pad_ref[...] = jnp.zeros_like(pad_ref)
    pad_ref[1:H + 1, 1:W + 1, :] = x_ref[0].astype(jnp.float32)

    # im2col: 9 shifted patches stacked along K -> ONE matmul with K = 9*Cin.
    # The MXU does all accumulation; no running VPU adds over an accumulator.
    patches = []
    for kh in range(3):
        for kw in range(3):
            p = pad_ref[kh:kh + H, kw:kw + W, :]      # (H, W, Cin)
            patches.append(p.reshape(HW, Cin))        # merge leading dims (cheap)
    slab = jnp.concatenate(patches, axis=1)           # (H*W, 9*Cin)

    conv = jnp.dot(slab, w_ref[...], preferred_element_type=jnp.float32)  # (HW, Cp)
    conv = conv + b_ref[...]
    conv_ref[...] = conv

    # Single-pass partial statistics (reduced across samples outside the kernel).
    s1 = jnp.sum(conv, axis=0, keepdims=True)          # (1, Cp)
    s2 = jnp.sum(conv * conv, axis=0, keepdims=True)   # (1, Cp)
    stats_ref[0] = jnp.concatenate([s1, s2], axis=0)   # (2, Cp)


def bn_relu_kernel(conv_ref, stats_ref, gamma_ref, beta_ref, out_ref, *, inv_count):
    """Batch-norm (from precomputed sum / sumsq) + ReLU, fused into one pass.

    conv_ref : (H*W, Cp)   VMEM   conv slab for this sample
    stats_ref: (2, Cp)     VMEM   global sum / sum-of-squares
    gamma_ref: (1, Cp)     VMEM
    beta_ref : (1, Cp)     VMEM
    out_ref  : (H*W, Cp)   VMEM
    """
    s1 = stats_ref[0:1, :]                         # (1, Cp) sum
    s2 = stats_ref[1:2, :]                         # (1, Cp) sum of squares
    mean = s1 * inv_count
    var = jnp.maximum(s2 * inv_count - mean * mean, 0.0)
    inv_std = lax.rsqrt(var + BN_EPS)
    scale = gamma_ref[...] * inv_std               # fold gamma * rsqrt(var + eps)
    shift = beta_ref[...] - mean * scale           # fold beta - mean * scale
    y = conv_ref[...] * scale + shift              # one fused pass
    out_ref[...] = jnp.maximum(y, 0.0).astype(out_ref.dtype)


def conv_batch_norm(x_nchw, w_oihw, bias, gamma, beta):
    """Forward pass of ConvBatchNorm. Input/output are NCHW like the PyTorch module."""
    N, Cin, H, W = x_nchw.shape
    Cout = w_oihw.shape[0]
    HW = H * W
    K = 9 * Cin
    Cp = ((Cout + 127) // 128) * 128               # lane-dense channel padding

    # Small layout plumbing (params are packed once; activations only NCHW<->NHWC).
    x_nhwc = jnp.transpose(x_nchw, (0, 2, 3, 1))
    # (Cout, Cin, 3, 3) -> (3, 3, Cin, Cout) -> (9*Cin, Cout) -> pad lanes to Cp.
    w_packed = jnp.transpose(w_oihw, (2, 3, 1, 0)).reshape(K, Cout)
    w_packed = jnp.pad(w_packed, ((0, 0), (0, Cp - Cout)))
    b_p = jnp.pad(bias, (0, Cp - Cout)).reshape(1, Cp)
    g_p = jnp.pad(gamma, (0, Cp - Cout)).reshape(1, Cp)
    be_p = jnp.pad(beta, (0, Cp - Cout)).reshape(1, Cp)

    cparams = pltpu.CompilerParams(
        dimension_semantics=("parallel",),
        vmem_limit_bytes=32 * 1024 * 1024,
    )

    # Pass 1: conv (single im2col matmul) + per-sample partial BN stats.
    conv, stats = pl.pallas_call(
        conv_stats_kernel,
        grid=(N,),
        in_specs=[
            pl.BlockSpec((1, H, W, Cin), lambda n: (n, 0, 0, 0)),
            pl.BlockSpec((K, Cp), lambda n: (0, 0)),
            pl.BlockSpec((1, Cp), lambda n: (0, 0)),
        ],
        out_specs=(
            pl.BlockSpec((HW, Cp), lambda n: (n, 0)),
            pl.BlockSpec((1, 2, Cp), lambda n: (n, 0, 0)),
        ),
        out_shape=(
            jax.ShapeDtypeStruct((N * HW, Cp), jnp.float32),
            jax.ShapeDtypeStruct((N, 2, Cp), jnp.float32),
        ),
        scratch_shapes=[pltpu.VMEM((H + 2, W + 2, Cin), jnp.float32)],
        compiler_params=cparams,
    )(x_nhwc, w_packed, b_p)

    # Tiny cross-sample reduce of the per-sample partial stats: (N, 2, Cp) -> (2, Cp).
    stats_total = jnp.sum(stats, axis=0)

    # Pass 2: fused scale/shift + ReLU epilogue over the lane-dense conv slab.
    y = pl.pallas_call(
        functools.partial(bn_relu_kernel, inv_count=1.0 / float(N * HW)),
        grid=(N,),
        in_specs=[
            pl.BlockSpec((HW, Cp), lambda n: (n, 0)),
            pl.BlockSpec((2, Cp), lambda n: (0, 0)),
            pl.BlockSpec((1, Cp), lambda n: (0, 0)),
            pl.BlockSpec((1, Cp), lambda n: (0, 0)),
        ],
        out_specs=pl.BlockSpec((HW, Cp), lambda n: (n, 0)),
        out_shape=jax.ShapeDtypeStruct((N * HW, Cp), jnp.float32),
        compiler_params=cparams,
    )(conv, stats_total, g_p, be_p)

    out_nhwc = y.reshape(N, H, W, Cp)[..., :Cout]
    return jnp.transpose(out_nhwc, (0, 3, 1, 2))   # back to NCHW


def _reference(x_nchw, w_oihw, bias, gamma, beta):
    """Pure-JAX reference (NCHW) mirroring PyTorch semantics, for verification."""
    conv = lax.conv_general_dilated(
        x_nchw, w_oihw, window_strides=(1, 1), padding=((1, 1), (1, 1)),
        dimension_numbers=("NCHW", "OIHW", "NCHW"))
    conv = conv + bias.reshape(1, -1, 1, 1)
    mean = jnp.mean(conv, axis=(0, 2, 3), keepdims=True)
    var = jnp.mean((conv - mean) ** 2, axis=(0, 2, 3), keepdims=True)
    xhat = (conv - mean) * lax.rsqrt(var + BN_EPS)
    y = xhat * gamma.reshape(1, -1, 1, 1) + beta.reshape(1, -1, 1, 1)
    return jnp.maximum(y, 0.0)


if __name__ == "__main__":
    # ConvBatchNorm(in_channels=4, out_channels=8, activation='ReLU')
    N, Cin, Cout, H, W = 2, 4, 8, 16, 16

    key = jax.random.PRNGKey(0)
    kx, kw, kb = jax.random.split(key, 3)

    x = jax.random.normal(kx, (N, Cin, H, W), dtype=jnp.float32)
    w = jax.random.normal(kw, (Cout, Cin, 3, 3), dtype=jnp.float32) * 0.1
    b = jax.random.normal(kb, (Cout,), dtype=jnp.float32) * 0.1
    gamma = jnp.ones((Cout,), dtype=jnp.float32)   # PyTorch BN default weight
    beta = jnp.zeros((Cout,), dtype=jnp.float32)   # PyTorch BN default bias

    out = conv_batch_norm(x, w, b, gamma, beta)
    out = jax.block_until_ready(out)

    ref = _reference(x, w, b, gamma, beta)
    assert out.shape == (N, Cout, H, W)
    assert jnp.allclose(out, ref, atol=1e-3, rtol=1e-3), "mismatch vs reference"

    print("KERNEL_OK")
</pallas_src>

<mosaic_0001>
module attributes {stable_mosaic.version = 11 : i64} {
  func.func @conv_stats_kernel(%arg0: i32, %arg1: memref<1x16x16x4xf32, #tpu.memory_space<vmem>>, %arg2: memref<36x128xf32, #tpu.memory_space<vmem>>, %arg3: memref<1x128xf32, #tpu.memory_space<vmem>>, %arg4: memref<256x128xf32, #tpu.memory_space<vmem>>, %arg5: memref<1x2x128xf32, #tpu.memory_space<vmem>>, %arg6: memref<18x18x4xf32, #tpu.memory_space<vmem>>) attributes {dimension_semantics = [#tpu.dimension_semantics<parallel>], iteration_bounds = array<i64: 2>, scalar_prefetch = 0 : i64, scratch_operands = 1 : i64, tpu.core_type = #tpu.core_type<tc>, window_params = [{transform_indices = @transform_0, window_bounds = array<i64: 1, 16, 16, 4>}, {pipeline_mode = #tpu.pipeline_mode<synchronous>, transform_indices = @transform_1, window_bounds = array<i64: 36, 128>}, {pipeline_mode = #tpu.pipeline_mode<synchronous>, transform_indices = @transform_2, window_bounds = array<i64: 1, 128>}, {transform_indices = @transform_3, window_bounds = array<i64: 256, 128>}, {transform_indices = @transform_4, window_bounds = array<i64: 1, 2, 128>}]} {
    %cst = arith.constant 0.000000e+00 : f32
    %0 = vector.broadcast %cst : f32 to vector<18x18x4xf32>
    %c0 = arith.constant 0 : index
    %c0_0 = arith.constant 0 : index
    %c0_1 = arith.constant 0 : index
    %1 = vector.load %arg6[%c0, %c0_0, %c0_1] : memref<18x18x4xf32, #tpu.memory_space<vmem>>, vector<18x18x4xf32>
    tpu.vector_store %arg6[%c0, %c0_0, %c0_1], %0 {strides = array<i32>} : memref<18x18x4xf32, #tpu.memory_space<vmem>>, vector<18x18x4xf32>,
    %c0_2 = arith.constant 0 : index
    %c0_3 = arith.constant 0 : index
    %c0_4 = arith.constant 0 : index
    %c0_5 = arith.constant 0 : index
    %2 = vector.load %arg1[%c0_2, %c0_3, %c0_4, %c0_5] : memref<1x16x16x4xf32, #tpu.memory_space<vmem>>, vector<1x16x16x4xf32>
    %3 = vector.shape_cast %2 : vector<1x16x16x4xf32> to vector<16x16x4xf32>
    %c1 = arith.constant 1 : index
    %c1_6 = arith.constant 1 : index
    %c0_7 = arith.constant 0 : index
    %4 = vector.load %arg6[%c1, %c1_6, %c0_7] : memref<18x18x4xf32, #tpu.memory_space<vmem>>, vector<16x16x4xf32>
    tpu.vector_store %arg6[%c1, %c1_6, %c0_7], %3 {strides = array<i32>} : memref<18x18x4xf32, #tpu.memory_space<vmem>>, vector<16x16x4xf32>,
    %c0_8 = arith.constant 0 : index
    %c0_9 = arith.constant 0 : index
    %c0_10 = arith.constant 0 : index
    %5 = vector.load %arg6[%c0_8, %c0_9, %c0_10] : memref<18x18x4xf32, #tpu.memory_space<vmem>>, vector<16x16x4xf32>
    %6 = vector.shape_cast %5 : vector<16x16x4xf32> to vector<256x4xf32>
    %c0_11 = arith.constant 0 : index
    %c1_12 = arith.constant 1 : index
    %c0_13 = arith.constant 0 : index
    %7 = vector.load %arg6[%c0_11, %c1_12, %c0_13] : memref<18x18x4xf32, #tpu.memory_space<vmem>>, vector<16x16x4xf32>
    %8 = vector.shape_cast %7 : vector<16x16x4xf32> to vector<256x4xf32>
    %c0_14 = arith.constant 0 : index
    %c2 = arith.constant 2 : index
    %c0_15 = arith.constant 0 : index
    %9 = vector.load %arg6[%c0_14, %c2, %c0_15] : memref<18x18x4xf32, #tpu.memory_space<vmem>>, vector<16x16x4xf32>
    %10 = vector.shape_cast %9 : vector<16x16x4xf32> to vector<256x4xf32>
    %c1_16 = arith.constant 1 : index
    %c0_17 = arith.constant 0 : index
    %c0_18 = arith.constant 0 : index
    %11 = vector.load %arg6[%c1_16, %c0_17, %c0_18] : memref<18x18x4xf32, #tpu.memory_space<vmem>>, vector<16x16x4xf32>
    %12 = vector.shape_cast %11 : vector<16x16x4xf32> to vector<256x4xf32>
    %c1_19 = arith.constant 1 : index
    %c1_20 = arith.constant 1 : index
    %c0_21 = arith.constant 0 : index
    %13 = vector.load %arg6[%c1_19, %c1_20, %c0_21] : memref<18x18x4xf32, #tpu.memory_space<vmem>>, vector<16x16x4xf32>
    %14 = vector.shape_cast %13 : vector<16x16x4xf32> to vector<256x4xf32>
    %c1_22 = arith.constant 1 : index
    %c2_23 = arith.constant 2 : index
    %c0_24 = arith.constant 0 : index
    %15 = vector.load %arg6[%c1_22, %c2_23, %c0_24] : memref<18x18x4xf32, #tpu.memory_space<vmem>>, vector<16x16x4xf32>
    %16 = vector.shape_cast %15 : vector<16x16x4xf32> to vector<256x4xf32>
    %c2_25 = arith.constant 2 : index
    %c0_26 = arith.constant 0 : index
    %c0_27 = arith.constant 0 : index
    %17 = vector.load %arg6[%c2_25, %c0_26, %c0_27] : memref<18x18x4xf32, #tpu.memory_space<vmem>>, vector<16x16x4xf32>
    %18 = vector.shape_cast %17 : vector<16x16x4xf32> to vector<256x4xf32>
    %c2_28 = arith.constant 2 : index
    %c1_29 = arith.constant 1 : index
    %c0_30 = arith.constant 0 : index
    %19 = vector.load %arg6[%c2_28, %c1_29, %c0_30] : memref<18x18x4xf32, #tpu.memory_space<vmem>>, vector<16x16x4xf32>
    %20 = vector.shape_cast %19 : vector<16x16x4xf32> to vector<256x4xf32>
    %c2_31 = arith.constant 2 : index
    %c2_32 = arith.constant 2 : index
    %c0_33 = arith.constant 0 : index
    %21 = vector.load %arg6[%c2_31, %c2_32, %c0_33] : memref<18x18x4xf32, #tpu.memory_space<vmem>>, vector<16x16x4xf32>
    %22 = vector.shape_cast %21 : vector<16x16x4xf32> to vector<256x4xf32>
    %23 = tpu.concatenate %6, %8, %10, %12, %14, %16, %18, %20, %22 in 1 : vector<256x4xf32>, vector<256x4xf32>, vector<256x4xf32>, vector<256x4xf32>, vector<256x4xf32>, vector<256x4xf32>, vector<256x4xf32>, vector<256x4xf32>, vector<256x4xf32> -> vector<256x36xf32>
    %c0_34 = arith.constant 0 : index
    %c0_35 = arith.constant 0 : index
    %24 = vector.load %arg2[%c0_34, %c0_35] : memref<36x128xf32, #tpu.memory_space<vmem>>, vector<36x128xf32>
    %cst_36 = arith.constant dense<0.000000e+00> : vector<256x128xf32>
    %25 = tpu.matmul %23, %24, %cst_36 {dimension_numbers = #tpu.dot_dimension_numbers<[1], [0], [0], [1], [0, 0, 1, 1], [], []>} : vector<256x36xf32>, vector<36x128xf32>, vector<256x128xf32> -> vector<256x128xf32>
    %c0_37 = arith.constant 0 : index
    %c0_38 = arith.constant 0 : index
    %26 = vector.load %arg3[%c0_37, %c0_38] : memref<1x128xf32, #tpu.memory_space<vmem>>, vector<1x128xf32>
    %27 = vector.broadcast %26 : vector<1x128xf32> to vector<256x128xf32>
    %28 = arith.addf %25, %27 : vector<256x128xf32>
    %c0_39 = arith.constant 0 : index
    %c0_40 = arith.constant 0 : index
    %29 = vector.load %arg4[%c0_39, %c0_40] : memref<256x128xf32, #tpu.memory_space<vmem>>, vector<256x128xf32>
    tpu.vector_store %arg4[%c0_39, %c0_40], %28 {strides = array<i32>} : memref<256x128xf32, #tpu.memory_space<vmem>>, vector<256x128xf32>,
    %cst_41 = arith.constant dense<0.000000e+00> : vector<128xf32>
    %30 = vector.multi_reduction <add>, %28, %cst_41 [0] : vector<256x128xf32> to vector<128xf32>
    %31 = vector.shape_cast %30 : vector<128xf32> to vector<1x128xf32>
    %32 = arith.mulf %28, %28 : vector<256x128xf32>
    %cst_42 = arith.constant dense<0.000000e+00> : vector<128xf32>
    %33 = vector.multi_reduction <add>, %32, %cst_42 [0] : vector<256x128xf32> to vector<128xf32>
    %34 = vector.shape_cast %33 : vector<128xf32> to vector<1x128xf32>
    %35 = tpu.concatenate %31, %34 in 0 : vector<1x128xf32>, vector<1x128xf32> -> vector<2x128xf32>
    %c0_43 = arith.constant 0 : index
    %c0_44 = arith.constant 0 : index
    %c0_45 = arith.constant 0 : index
    %36 = vector.load %arg5[%c0_43, %c0_44, %c0_45] : memref<1x2x128xf32, #tpu.memory_space<vmem>>, vector<1x2x128xf32>
    %37 = vector.shape_cast %36 : vector<1x2x128xf32> to vector<2x128xf32>
    %38 = vector.shape_cast %35 : vector<2x128xf32> to vector<1x2x128xf32>
    tpu.vector_store %arg5[%c0_43, %c0_44, %c0_45], %38 {strides = array<i32>} : memref<1x2x128xf32, #tpu.memory_space<vmem>>, vector<1x2x128xf32>,
    return
  }
  func.func @transform_0(%arg0: i32) -> (i32, i32, i32, i32) {
    %c0_i32 = arith.constant 0 : i32
    %c0_i32_0 = arith.constant 0 : i32
    %c0_i32_1 = arith.constant 0 : i32
    %c0_i32_2 = arith.constant 0 : i32
    return %arg0, %c0_i32, %c0_i32_0, %c0_i32_1 : i32, i32, i32, i32
  }
  func.func @transform_1(%arg0: i32) -> (i32, i32) {
    %c0_i32 = arith.constant 0 : i32
    %c0_i32_0 = arith.constant 0 : i32
    %c0_i32_1 = arith.constant 0 : i32
    return %c0_i32, %c0_i32_0 : i32, i32
  }
  func.func @transform_2(%arg0: i32) -> (i32, i32) {
    %c0_i32 = arith.constant 0 : i32
    %c0_i32_0 = arith.constant 0 : i32
    %c0_i32_1 = arith.constant 0 : i32
    return %c0_i32, %c0_i32_0 : i32, i32
  }
  func.func @transform_3(%arg0: i32) -> (i32, i32) {
    %c0_i32 = arith.constant 0 : i32
    %c0_i32_0 = arith.constant 0 : i32
    return %arg0, %c0_i32 : i32, i32
  }
  func.func @transform_4(%arg0: i32) -> (i32, i32, i32) {
    %c0_i32 = arith.constant 0 : i32
    %c0_i32_0 = arith.constant 0 : i32
    %c0_i32_1 = arith.constant 0 : i32
    return %arg0, %c0_i32, %c0_i32_0 : i32, i32, i32
  }
}

</mosaic_0001>

<llo_original>
// kernel: tpu_custom_call.1
$region0: #{tpu_custom_call.1}
  #allocation0 [shape = 'u32[]', space=smem, size = 0x4, offset = 0x4, fixed_abs, tag = 'smem constant byte address 0x4 - core index']
  #allocation1 [shape = 'u32[144,128]{1,0:T(1,128)}', space=vmem, size = 0x12000, scoped, tag = 'internal scratch']
  #allocation2 [shape = 'f32[18,18,4]{2,1,0:T(8,128)}', space=vmem, size = 0x36000, scoped, tag = 'scratch operand']
  %s0 = inlined_call_operand.vmem [shape: f32[2,16,16,4], index: 0, kind: input, shape index: {}]
  %s1 = inlined_call_operand.vmem [shape: f32[36,128], index: 1, kind: input, shape index: {}]
  %s2 = inlined_call_operand.vmem [shape: f32[1,128], index: 2, kind: input, shape index: {}]
  %s3 = inlined_call_operand.hbm [shape: f32[512,128], index: 3, kind: output, shape index: {0}]
  %s4 = inlined_call_operand.hbm [shape: f32[2,2,128], index: 4, kind: output, shape index: {1}]
  %5 = xla_tuple %s3, %s4
  %s6 = sld [smem:[#allocation0]]
  $region53: #{tpu_custom_call.1} parent=0
    _
  %s8 = ssub.s32 1, %s6
  %s9 = scalar_select 0, %s8, %s6
  $region1: #{tpu_custom_call.1} parent=0
    #allocation3 [shape = 'u8[262144]{0}', space=vmem, size = 0x40000, scoped, tag = 'output window, operand 0']
    #allocation4 [shape = 's32[2]{0}', space=sflag, size = 0x8, scoped, tag = 'scoped memory for tpu_custom_call.1']
    #allocation5 [shape = 'u8[2048]{0}', space=vmem, size = 0x800, scoped, tag = 'output window, operand 1']
    #allocation6 [shape = 's32[2]{0}', space=sflag, size = 0x8, scoped, tag = 'scoped memory for tpu_custom_call.1']
    %10 = vsyncpa [#allocation4], 0
    %s11 = scalar_lea.sflag [#allocation4], 1
    %12 = vsyncpa %s11, 0
    %13 = vsyncpa [#allocation6], 0
    %s14 = scalar_lea.sflag [#allocation6], 1
    %15 = vsyncpa %s14, 0
    loop: start=0, step=1, limit=4
    $region2: #{tpu_custom_call.1} parent=1 // loop_pre_header
      _
    $region3: #{tpu_custom_call.1} parent=1 // loop_header
      %s17 = sphi 0, %s21
      %p18 = scmp.ge.s32.totalorder %s17, 4
      %s27 = sphi 0, %s29
      %s30 = sphi 0, %s27
      %s31 = sphi 0, %s30
      %s47 = sphi 0, %s31
      %s51 = sphi 0, %s51
      %s53 = sphi 0, %s51
      %s54 = sphi 0, %s53
      %s68 = sphi 0, %s54
      %s72 = sphi 0, %s72
      %s74 = sphi 0, %s72
      %s75 = sphi 0, %s74
      %s89 = sphi 0, %s75
      %s95 = sphi 0, %s97
      %s98 = sphi 0, %s95
      %s99 = sphi 0, %s98
      %s115 = sphi 0, %s99
      %s121 = sphi 0, %s123
      %s124 = sphi 0, %s121
      %s125 = sphi 0, %s124
      %s141 = sphi 0, %s125
    $region4: #{tpu_custom_call.1} parent=1 // loop_header_branch
      %20 = sbr.rel (%p18) target = $region8
    $region5: #{tpu_custom_call.1} parent=1 // loop_body
      %s22 = ssub.s32 %s17, 1
      %s23 = ssub.s32 %s17, 2
      %s24 = sadd.s32 %s17, 1
      %s25 = ssub.s32 %s17, %s24
      %p26 = scmp.eq.s32.totalorder %s25, 0
      %s28 = sadd.s32 %s27, 1
      %s29 = scalar_select %p26, %s27, %s28
      %p32 = pneg %p26
      %p33 = scmp.eq.s32.totalorder %s17, 1
      %p34 = por %p32, %p33
      %p35 = scmp.ne.s32.totalorder %s27, %s30
      %p36 = scmp.eq.s32.totalorder %s17, 0
      %p37 = por %p35, %p36
      %p38 = scmp.ne.s32.totalorder %s27, %s30
      %p39 = scmp.eq.s32.totalorder %s22, 1
      %p40 = por %p38, %p39
      %p41 = scmp.ne.s32.totalorder %s30, %s31
      %p42 = scmp.eq.s32.totalorder %s22, 0
      %p43 = por %p41, %p42
      %p44 = scmp.ne.s32.totalorder %s30, %s31
      %p45 = scmp.eq.s32.totalorder %s23, 1
      %p46 = por %p44, %p45
      %p48 = scmp.ne.s32.totalorder %s31, %s47
      %p49 = scmp.eq.s32.totalorder %s23, 0
      %p50 = por %p48, %p49
      %s52 = sadd.s32 %s51, 1
      %p55 = scmp.eq.s32.totalorder %s17, 1
      %p56 = scmp.ne.s32.totalorder %s51, %s53
      %p57 = scmp.eq.s32.totalorder %s17, 0
      %p58 = por %p56, %p57
      %p59 = scmp.ne.s32.totalorder %s51, %s53
      %p60 = scmp.eq.s32.totalorder %s22, 1
      %p61 = por %p59, %p60
      %p62 = scmp.ne.s32.totalorder %s53, %s54
      %p63 = scmp.eq.s32.totalorder %s22, 0
      %p64 = por %p62, %p63
      %p65 = scmp.ne.s32.totalorder %s53, %s54
      %p66 = scmp.eq.s32.totalorder %s23, 1
      %p67 = por %p65, %p66
      %p69 = scmp.ne.s32.totalorder %s54, %s68
      %p70 = scmp.eq.s32.totalorder %s23, 0
      %p71 = por %p69, %p70
      %s73 = sadd.s32 %s72, 1
      %p76 = scmp.eq.s32.totalorder %s17, 1
      %p77 = scmp.ne.s32.totalorder %s72, %s74
      %p78 = scmp.eq.s32.totalorder %s17, 0
      %p79 = por %p77, %p78
      %p80 = scmp.ne.s32.totalorder %s72, %s74
      %p81 = scmp.eq.s32.totalorder %s22, 1
      %p82 = por %p80, %p81
      %p83 = scmp.ne.s32.totalorder %s74, %s75
      %p84 = scmp.eq.s32.totalorder %s22, 0
      %p85 = por %p83, %p84
      %p86 = scmp.ne.s32.totalorder %s74, %s75
      %p87 = scmp.eq.s32.totalorder %s23, 1
      %p88 = por %p86, %p87
      %p90 = scmp.ne.s32.totalorder %s75, %s89
      %p91 = scmp.eq.s32.totalorder %s23, 0
      %p92 = por %p90, %p91
      %s93 = ssub.s32 %s17, %s24
      %p94 = scmp.eq.s32.totalorder %s93, 0
      %s96 = sadd.s32 %s95, 1
      %s97 = scalar_select %p94, %s95, %s96
      %p100 = pneg %p94
      %p101 = scmp.eq.s32.totalorder %s17, 1
      %p102 = por %p100, %p101
      %p103 = scmp.ne.s32.totalorder %s95, %s98
      %p104 = scmp.eq.s32.totalorder %s17, 0
      %p105 = por %p103, %p104
      %p106 = scmp.ne.s32.totalorder %s95, %s98
      %p107 = scmp.eq.s32.totalorder %s22, 1
      %p108 = por %p106, %p107
      %p109 = scmp.ne.s32.totalorder %s98, %s99
      %p110 = scmp.eq.s32.totalorder %s22, 0
      %p111 = por %p109, %p110
      %p112 = scmp.ne.s32.totalorder %s98, %s99
      %p113 = scmp.eq.s32.totalorder %s23, 1
      %p114 = por %p112, %p113
      %p116 = scmp.ne.s32.totalorder %s99, %s115
      %p117 = scmp.eq.s32.totalorder %s23, 0
      %p118 = por %p116, %p117
      %s119 = ssub.s32 %s17, %s24
      %p120 = scmp.eq.s32.totalorder %s119, 0
      %s122 = sadd.s32 %s121, 1
      %s123 = scalar_select %p120, %s121, %s122
      %p126 = pneg %p120
      %p127 = scmp.eq.s32.totalorder %s17, 1
      %p128 = por %p126, %p127
      %p129 = scmp.ne.s32.totalorder %s121, %s124
      %p130 = scmp.eq.s32.totalorder %s17, 0
      %p131 = por %p129, %p130
      %p132 = scmp.ne.s32.totalorder %s121, %s124
      %p133 = scmp.eq.s32.totalorder %s22, 1
      %p134 = por %p132, %p133
      %p135 = scmp.ne.s32.totalorder %s124, %s125
      %p136 = scmp.eq.s32.totalorder %s22, 0
      %p137 = por %p135, %p136
      %p138 = scmp.ne.s32.totalorder %s124, %s125
      %p139 = scmp.eq.s32.totalorder %s23, 1
      %p140 = por %p138, %p139
      %p142 = scmp.ne.s32.totalorder %s125, %s141
      %p143 = scmp.eq.s32.totalorder %s23, 0
      %p144 = por %p142, %p143
      %p145 = scmp.le.s32.totalorder 1, %s17
      %p146 = scmp.lt.s32.totalorder %s17, 3
      %p147 = pnand %p145, %p146
      %p148 = pneg %p147
      // Predicated region
      $region9: #{tpu_custom_call.1} parent=5 // pred_check
        _
      $region10: #{tpu_custom_call.1} parent=5 // pred_check_branch
        %150 = sbr.rel (%p147) target = $region12
      $region11: #{tpu_custom_call.1} parent=5 // pred_region
        %s151 = ssub.s32 %s17, 1
        // Predicated region
        $region13: #{tpu_custom_call.1} parent=11 // pred_check
          %p152 = pneg %p64
        $region14: #{tpu_custom_call.1} parent=11 // pred_check_branch
          %154 = sbr.rel (%p152) target = $region16
        $region15: #{tpu_custom_call.1} parent=11 // pred_region
          _
        $region16: #{tpu_custom_call.1} parent=11 // pred_fallthru
          _
        // Predicated region
        $region17: #{tpu_custom_call.1} parent=11 // pred_check
          %p155 = pneg %p85
        $region18: #{tpu_custom_call.1} parent=11 // pred_check_branch
          %157 = sbr.rel (%p155) target = $region20
        $region19: #{tpu_custom_call.1} parent=11 // pred_region
          _
        $region20: #{tpu_custom_call.1} parent=11 // pred_fallthru
          _
      $region12: #{tpu_custom_call.1} parent=5 // pred_fallthru
        _
      %p158 = scmp.lt.s32.totalorder %s17, 2
      // Predicated region
      $region21: #{tpu_custom_call.1} parent=5 // pred_check
        %p159 = pneg %p158
      $region22: #{tpu_custom_call.1} parent=5 // pred_check_branch
        %161 = sbr.rel (%p159) target = $region24
      $region23: #{tpu_custom_call.1} parent=5 // pred_region
        // Predicated region
        $region25: #{tpu_custom_call.1} parent=23 // pred_check
          %p162 = pneg %p37
        $region26: #{tpu_custom_call.1} parent=23 // pred_check_branch
          %164 = sbr.rel (%p162) target = $region28
        $region27: #{tpu_custom_call.1} parent=23 // pred_region
          %p165 = scmp.lt.s32.totalorder %s17, 1
          %s166 = scalar_select %p165, %s17, 1
          %s167 = smul.addr %s166, 32
          %s168 = smul.addr %s167, 8
          %s169 = scalar_lea.vmem %s0, %s168
        $region28: #{tpu_custom_call.1} parent=23 // pred_fallthru
          _
      $region24: #{tpu_custom_call.1} parent=5 // pred_fallthru
        _
      %p170 = scmp.le.s32.totalorder 1, %s17
      %p171 = scmp.lt.s32.totalorder %s17, 3
      %p172 = pnand %p170, %p171
      %p173 = pneg %p172
      // Predicated region
      $region29: #{tpu_custom_call.1} parent=5 // pred_check
        _
      $region30: #{tpu_custom_call.1} parent=5 // pred_check_branch
        %175 = sbr.rel (%p172) target = $region32
      $region31: #{tpu_custom_call.1} parent=5 // pred_region
        %s176 = ssub.s32 %s17, 1
        %p177 = scmp.lt.s32.totalorder %s22, 1
        %s178 = scalar_select %p177, %s22, 1
        %s179 = smul.addr %s178, 32
        %s180 = smul.addr %s179, 8
        %s181 = scalar_lea.vmem %s0, %s180
        %p182 = pneg %p43
        %p183 = pneg %p40
        %p184 = pneg %p64
        %p185 = pneg %p61
        %p186 = pneg %p85
        %p187 = pneg %p82
        %p188 = pneg %p111
        %p189 = pneg %p108
        %s190 = sand.u32 %s98, 1
        %s191 = scalar_lea.sflag [#allocation4], %s190
        %s192 = sand.u32 %s98, 1
        %s193 = smul.addr %s192, 256
        %s194 = scalar_lea.vmem [#allocation3], %s193
        %p195 = pneg %p137
        %p196 = pneg %p134
        %s197 = sand.u32 %s124, 1
        %s198 = scalar_lea.sflag [#allocation6], %s197
        %s199 = sand.u32 %s124, 1
        %s200 = smul.addr %s199, 2
        %s201 = scalar_lea.vmem [#allocation5], %s200
        %p202 = scmp.lt.s32.totalorder %s22, 1
        %s203 = scalar_select %p202, %s22, 1
        %s204 = smul.addr %s203, 32
        %s205 = smul.addr %s204, 8
        %s206 = scalar_lea.vmem %s0, %s205
        %s207 = smul.u32 32, %s22
        %vm208 = vcmask 31744
        %209 = vst.msk [vmem:[#allocation2] sm:$0xff] %vm208, 0.0
        %210 = vst.msk [vmem:[#allocation2 + $0x8] sm:$0xff] %vm208, 0.0
        %vm211 = vcmask 25600
        %212 = vst.msk [vmem:[#allocation2 + $0x10] sm:$0x3] %vm211, 0.0
        %213 = vst.msk [vmem:[#allocation2 + $0x18] sm:$0xff] %vm208, 0.0
        %214 = vst.msk [vmem:[#allocation2 + $0x20] sm:$0xff] %vm208, 0.0
        %215 = vst.msk [vmem:[#allocation2 + $0x28] sm:$0x3] %vm211, 0.0
        %216 = vst.msk [vmem:[#allocation2 + $0x30] sm:$0xff] %vm208, 0.0
        %217 = vst.msk [vmem:[#allocation2 + $0x38] sm:$0xff] %vm208, 0.0
        %218 = vst.msk [vmem:[#allocation2 + $0x40] sm:$0x3] %vm211, 0.0
        %219 = vst.msk [vmem:[#allocation2 + $0x48] sm:$0xff] %vm208, 0.0
        %220 = vst.msk [vmem:[#allocation2 + $0x50] sm:$0xff] %vm208, 0.0
        %221 = vst.msk [vmem:[#allocation2 + $0x58] sm:$0x3] %vm211, 0.0
        %222 = vst.msk [vmem:[#allocation2 + $0x60] sm:$0xff] %vm208, 0.0
        %223 = vst.msk [vmem:[#allocation2 + $0x68] sm:$0xff] %vm208, 0.0
        %224 = vst.msk [vmem:[#allocation2 + $0x70] sm:$0x3] %vm211, 0.0
        %225 = vst.msk [vmem:[#allocation2 + $0x78] sm:$0xff] %vm208, 0.0
        %226 = vst.msk [vmem:[#allocation2 + $0x80] sm:$0xff] %vm208, 0.0
        %227 = vst.msk [vmem:[#allocation2 + $0x88] sm:$0x3] %vm211, 0.0
        %228 = vst.msk [vmem:[#allocation2 + $0x90] sm:$0xff] %vm208, 0.0
        %229 = vst.msk [vmem:[#allocation2 + $0x98] sm:$0xff] %vm208, 0.0
        %230 = vst.msk [vmem:[#allocation2 + $0xa0] sm:$0x3] %vm211, 0.0
        %231 = vst.msk [vmem:[#allocation2 + $0xa8] sm:$0xff] %vm208, 0.0
        %232 = vst.msk [vmem:[#allocation2 + $0xb0] sm:$0xff] %vm208, 0.0
        %233 = vst.msk [vmem:[#allocation2 + $0xb8] sm:$0x3] %vm211, 0.0
        %234 = vst.msk [vmem:[#allocation2 + $0xc0] sm:$0xff] %vm208, 0.0
        %235 = vst.msk [vmem:[#allocation2 + $0xc8] sm:$0xff] %vm208, 0.0
        %236 = vst.msk [vmem:[#allocation2 + $0xd0] sm:$0x3] %vm211, 0.0
        %237 = vst.msk [vmem:[#allocation2 + $0xd8] sm:$0xff] %vm208, 0.0
        %238 = vst.msk [vmem:[#allocation2 + $0xe0] sm:$0xff] %vm208, 0.0
        %239 = vst.msk [vmem:[#allocation2 + $0xe8] sm:$0x3] %vm211, 0.0
        %240 = vst.msk [vmem:[#allocation2 + $0xf0] sm:$0xff] %vm208, 0.0
        %241 = vst.msk [vmem:[#allocation2 + $0xf8] sm:$0xff] %vm208, 0.0
        %242 = vst.msk [vmem:[#allocation2 + $0x100] sm:$0x3] %vm211, 0.0
        %243 = vst.msk [vmem:[#allocation2 + $0x108] sm:$0xff] %vm208, 0.0
        %244 = vst.msk [vmem:[#allocation2 + $0x110] sm:$0xff] %vm208, 0.0
        %245 = vst.msk [vmem:[#allocation2 + $0x118] sm:$0x3] %vm211, 0.0
        %246 = vst.msk [vmem:[#allocation2 + $0x120] sm:$0xff] %vm208, 0.0
        %247 = vst.msk [vmem:[#allocation2 + $0x128] sm:$0xff] %vm208, 0.0
        %248 = vst.msk [vmem:[#allocation2 + $0x130] sm:$0x3] %vm211, 0.0
        %249 = vst.msk [vmem:[#allocation2 + $0x138] sm:$0xff] %vm208, 0.0
        %250 = vst.msk [vmem:[#allocation2 + $0x140] sm:$0xff] %vm208, 0.0
        %251 = vst.msk [vmem:[#allocation2 + $0x148] sm:$0x3] %vm211, 0.0
        %252 = vst.msk [vmem:[#allocation2 + $0x150] sm:$0xff] %vm208, 0.0
        %253 = vst.msk [vmem:[#allocation2 + $0x158] sm:$0xff] %vm208, 0.0
        %254 = vst.msk [vmem:[#allocation2 + $0x160] sm:$0x3] %vm211, 0.0
        %255 = vst.msk [vmem:[#allocation2 + $0x168] sm:$0xff] %vm208, 0.0
        %256 = vst.msk [vmem:[#allocation2 + $0x170] sm:$0xff] %vm208, 0.0
        %257 = vst.msk [vmem:[#allocation2 + $0x178] sm:$0x3] %vm211, 0.0
        %258 = vst.msk [vmem:[#allocation2 + $0x180] sm:$0xff] %vm208, 0.0
        %259 = vst.msk [vmem:[#allocation2 + $0x188] sm:$0xff] %vm208, 0.0
        %260 = vst.msk [vmem:[#allocation2 + $0x190] sm:$0x3] %vm211, 0.0
        %261 = vst.msk [vmem:[#allocation2 + $0x198] sm:$0xff] %vm208, 0.0
        %262 = vst.msk [vmem:[#allocation2 + $0x1a0] sm:$0xff] %vm208, 0.0
        %263 = vst.msk [vmem:[#allocation2 + $0x1a8] sm:$0x3] %vm211, 0.0
        %v264 = vld [vmem:[%s206] sm:$0xff]
        %v265 = vld [vmem:[%s206 + $0x8] sm:$0xff]
        %v266 = vld [vmem:[%s206 + $0x10] sm:$0xff]
        %v267 = vld [vmem:[%s206 + $0x18] sm:$0xff]
        %v268 = vld [vmem:[%s206 + $0x20] sm:$0xff]
        %v269 = vld [vmem:[%s206 + $0x28] sm:$0xff]
        %v270 = vld [vmem:[%s206 + $0x30] sm:$0xff]
        %v271 = vld [vmem:[%s206 + $0x38] sm:$0xff]
        %v272 = vld [vmem:[%s206 + $0x40] sm:$0xff]
        %v273 = vld [vmem:[%s206 + $0x48] sm:$0xff]
        %v274 = vld [vmem:[%s206 + $0x50] sm:$0xff]
        %v275 = vld [vmem:[%s206 + $0x58] sm:$0xff]
        %v276 = vld [vmem:[%s206 + $0x60] sm:$0xff]
        %v277 = vld [vmem:[%s206 + $0x68] sm:$0xff]
        %v278 = vld [vmem:[%s206 + $0x70] sm:$0xff]
        %v279 = vld [vmem:[%s206 + $0x78] sm:$0xff]
        %v280 = vld [vmem:[%s206 + $0x80] sm:$0xff]
        %v281 = vld [vmem:[%s206 + $0x88] sm:$0xff]
        %v282 = vld [vmem:[%s206 + $0x90] sm:$0xff]
        %v283 = vld [vmem:[%s206 + $0x98] sm:$0xff]
        %v284 = vld [vmem:[%s206 + $0xa0] sm:$0xff]
        %v285 = vld [vmem:[%s206 + $0xa8] sm:$0xff]
        %v286 = vld [vmem:[%s206 + $0xb0] sm:$0xff]
        %v287 = vld [vmem:[%s206 + $0xb8] sm:$0xff]
        %v288 = vld [vmem:[%s206 + $0xc0] sm:$0xff]
        %v289 = vld [vmem:[%s206 + $0xc8] sm:$0xff]
        %v290 = vld [vmem:[%s206 + $0xd0] sm:$0xff]
        %v291 = vld [vmem:[%s206 + $0xd8] sm:$0xff]
        %v292 = vld [vmem:[%s206 + $0xe0] sm:$0xff]
        %v293 = vld [vmem:[%s206 + $0xe8] sm:$0xff]
        %v294 = vld [vmem:[%s206 + $0xf0] sm:$0xff]
        %v295 = vld [vmem:[%s206 + $0xf8] sm:$0xff]
        %s296 = scalar_lea.vmem [#allocation2], 24
        %297 = vst.msk [vmem:[%s296 + $0x1] sm:$0xff] %vm208, %v264
        %298 = vst.msk [vmem:[%s296 + $0x9] sm:$0xff] %vm208, %v265
        %299 = vst.msk [vmem:[%s296 + $0x19] sm:$0xff] %vm208, %v266
        %300 = vst.msk [vmem:[%s296 + $0x21] sm:$0xff] %vm208, %v267
        %301 = vst.msk [vmem:[%s296 + $0x31] sm:$0xff] %vm208, %v268
        %302 = vst.msk [vmem:[%s296 + $0x39] sm:$0xff] %vm208, %v269
        %303 = vst.msk [vmem:[%s296 + $0x49] sm:$0xff] %vm208, %v270
        %304 = vst.msk [vmem:[%s296 + $0x51] sm:$0xff] %vm208, %v271
        %305 = vst.msk [vmem:[%s296 + $0x61] sm:$0xff] %vm208, %v272
        %306 = vst.msk [vmem:[%s296 + $0x69] sm:$0xff] %vm208, %v273
        %307 = vst.msk [vmem:[%s296 + $0x79] sm:$0xff] %vm208, %v274
        %308 = vst.msk [vmem:[%s296 + $0x81] sm:$0xff] %vm208, %v275
        %309 = vst.msk [vmem:[%s296 + $0x91] sm:$0xff] %vm208, %v276
        %310 = vst.msk [vmem:[%s296 + $0x99] sm:$0xff] %vm208, %v277
        %311 = vst.msk [vmem:[%s296 + $0xa9] sm:$0xff] %vm208, %v278
        %312 = vst.msk [vmem:[%s296 + $0xb1] sm:$0xff] %vm208, %v279
        %313 = vst.msk [vmem:[%s296 + $0xc1] sm:$0xff] %vm208, %v280
        %314 = vst.msk [vmem:[%s296 + $0xc9] sm:$0xff] %vm208, %v281
        %315 = vst.msk [vmem:[%s296 + $0xd9] sm:$0xff] %vm208, %v282
        %316 = vst.msk [vmem:[%s296 + $0xe1] sm:$0xff] %vm208, %v283
        %317 = vst.msk [vmem:[%s296 + $0xf1] sm:$0xff] %vm208, %v284
        %318 = vst.msk [vmem:[%s296 + $0xf9] sm:$0xff] %vm208, %v285
        %319 = vst.msk [vmem:[%s296 + $0x109] sm:$0xff] %vm208, %v286
        %320 = vst.msk [vmem:[%s296 + $0x111] sm:$0xff] %vm208, %v287
        %321 = vst.msk [vmem:[%s296 + $0x121] sm:$0xff] %vm208, %v288
        %322 = vst.msk [vmem:[%s296 + $0x129] sm:$0xff] %vm208, %v289
        %323 = vst.msk [vmem:[%s296 + $0x139] sm:$0xff] %vm208, %v290
        %324 = vst.msk [vmem:[%s296 + $0x141] sm:$0xff] %vm208, %v291
        %325 = vst.msk [vmem:[%s296 + $0x151] sm:$0xff] %vm208, %v292
        %326 = vst.msk [vmem:[%s296 + $0x159] sm:$0xff] %vm208, %v293
        %327 = vst.msk [vmem:[%s296 + $0x169] sm:$0xff] %vm208, %v294
        %328 = vst.msk [vmem:[%s296 + $0x171] sm:$0xff] %vm208, %v295
        %v329 = vld [vmem:[#allocation2] sm:$0xff]
        %v330 = vld [vmem:[#allocation2 + $0x8] sm:$0xff]
        %v331 = vld [vmem:[#allocation2 + $0x18] sm:$0xff]
        %v332 = vld [vmem:[#allocation2 + $0x20] sm:$0xff]
        %v333 = vld [vmem:[#allocation2 + $0x30] sm:$0xff]
        %v334 = vld [vmem:[#allocation2 + $0x38] sm:$0xff]
        %v335 = vld [vmem:[#allocation2 + $0x48] sm:$0xff]
        %v336 = vld [vmem:[#allocation2 + $0x50] sm:$0xff]
        %v337 = vld [vmem:[#allocation2 + $0x60] sm:$0xff]
        %v338 = vld [vmem:[#allocation2 + $0x68] sm:$0xff]
        %v339 = vld [vmem:[#allocation2 + $0x78] sm:$0xff]
        %v340 = vld [vmem:[#allocation2 + $0x80] sm:$0xff]
        %v341 = vld [vmem:[#allocation2 + $0x90] sm:$0xff]
        %v342 = vld [vmem:[#allocation2 + $0x98] sm:$0xff]
        %v343 = vld [vmem:[#allocation2 + $0xa8] sm:$0xff]
        %v344 = vld [vmem:[#allocation2 + $0xb0] sm:$0xff]
        %v345 = vld [vmem:[#allocation2 + $0xc0] sm:$0xff]
        %v346 = vld [vmem:[#allocation2 + $0xc8] sm:$0xff]
        %v347 = vld [vmem:[#allocation2 + $0xd8] sm:$0xff]
        %v348 = vld [vmem:[#allocation2 + $0xe0] sm:$0xff]
        %v349 = vld [vmem:[#allocation2 + $0xf0] sm:$0xff]
        %v350 = vld [vmem:[#allocation2 + $0xf8] sm:$0xff]
        %v351 = vld [vmem:[#allocation2 + $0x108] sm:$0xff]
        %v352 = vld [vmem:[#allocation2 + $0x110] sm:$0xff]
        %v353 = vld [vmem:[#allocation2 + $0x120] sm:$0xff]
        %v354 = vld [vmem:[#allocation2 + $0x128] sm:$0xff]
        %v355 = vld [vmem:[#allocation2 + $0x138] sm:$0xff]
        %v356 = vld [vmem:[#allocation2 + $0x140] sm:$0xff]
        %v357 = vld [vmem:[#allocation2 + $0x150] sm:$0xff]
        %v358 = vld [vmem:[#allocation2 + $0x158] sm:$0xff]
        %v359 = vld [vmem:[#allocation2 + $0x168] sm:$0xff]
        %v360 = vld [vmem:[#allocation2 + $0x170] sm:$0xff]
        %v361 = vld [vmem:[#allocation2 + $0x1] sm:$0xff]
        %v362 = vld [vmem:[#allocation2 + $0x9] sm:$0xff]
        %v363 = vld [vmem:[#allocation2 + $0x19] sm:$0xff]
        %v364 = vld [vmem:[#allocation2 + $0x21] sm:$0xff]
        %v365 = vld [vmem:[#allocation2 + $0x31] sm:$0xff]
        %v366 = vld [vmem:[#allocation2 + $0x39] sm:$0xff]
        %v367 = vld [vmem:[#allocation2 + $0x49] sm:$0xff]
        %v368 = vld [vmem:[#allocation2 + $0x51] sm:$0xff]
        %v369 = vld [vmem:[#allocation2 + $0x61] sm:$0xff]
        %v370 = vld [vmem:[#allocation2 + $0x69] sm:$0xff]
        %v371 = vld [vmem:[#allocation2 + $0x79] sm:$0xff]
        %v372 = vld [vmem:[#allocation2 + $0x81] sm:$0xff]
        %v373 = vld [vmem:[#allocation2 + $0x91] sm:$0xff]
        %v374 = vld [vmem:[#allocation2 + $0x99] sm:$0xff]
        %v375 = vld [vmem:[#allocation2 + $0xa9] sm:$0xff]
        %v376 = vld [vmem:[#allocation2 + $0xb1] sm:$0xff]
        %v377 = vld [vmem:[#allocation2 + $0xc1] sm:$0xff]
        %v378 = vld [vmem:[#allocation2 + $0xc9] sm:$0xff]
        %v379 = vld [vmem:[#allocation2 + $0xd9] sm:$0xff]
        %v380 = vld [vmem:[#allocation2 + $0xe1] sm:$0xff]
        %v381 = vld [vmem:[#allocation2 + $0xf1] sm:$0xff]
        %v382 = vld [vmem:[#allocation2 + $0xf9] sm:$0xff]
        %v383 = vld [vmem:[#allocation2 + $0x109] sm:$0xff]
        %v384 = vld [vmem:[#allocation2 + $0x111] sm:$0xff]
        %v385 = vld [vmem:[#allocation2 + $0x121] sm:$0xff]
        %v386 = vld [vmem:[#allocation2 + $0x129] sm:$0xff]
        %v387 = vld [vmem:[#allocation2 + $0x139] sm:$0xff]
        %v388 = vld [vmem:[#allocation2 + $0x141] sm:$0xff]
        %v389 = vld [vmem:[#allocation2 + $0x151] sm:$0xff]
        %v390 = vld [vmem:[#allocation2 + $0x159] sm:$0xff]
        %v391 = vld [vmem:[#allocation2 + $0x169] sm:$0xff]
        %v392 = vld [vmem:[#allocation2 + $0x171] sm:$0xff]
        %v393 = vld [vmem:[#allocation2 + $0x2] sm:$0xff]
        %v394 = vld [vmem:[#allocation2 + $0xa] sm:$0xff]
        %v395 = vld [vmem:[#allocation2 + $0x1a] sm:$0xff]
        %v396 = vld [vmem:[#allocation2 + $0x22] sm:$0xff]
        %v397 = vld [vmem:[#allocation2 + $0x32] sm:$0xff]
        %v398 = vld [vmem:[#allocation2 + $0x3a] sm:$0xff]
        %v399 = vld [vmem:[#allocation2 + $0x4a] sm:$0xff]
        %v400 = vld [vmem:[#allocation2 + $0x52] sm:$0xff]
        %v401 = vld [vmem:[#allocation2 + $0x62] sm:$0xff]
        %v402 = vld [vmem:[#allocation2 + $0x6a] sm:$0xff]
        %v403 = vld [vmem:[#allocation2 + $0x7a] sm:$0xff]
        %v404 = vld [vmem:[#allocation2 + $0x82] sm:$0xff]
        %v405 = vld [vmem:[#allocation2 + $0x92] sm:$0xff]
        %v406 = vld [vmem:[#allocation2 + $0x9a] sm:$0xff]
        %v407 = vld [vmem:[#allocation2 + $0xaa] sm:$0xff]
        %v408 = vld [vmem:[#allocation2 + $0xb2] sm:$0xff]
        %v409 = vld [vmem:[#allocation2 + $0xc2] sm:$0xff]
        %v410 = vld [vmem:[#allocation2 + $0xca] sm:$0xff]
        %v411 = vld [vmem:[#allocation2 + $0xda] sm:$0xff]
        %v412 = vld [vmem:[#allocation2 + $0xe2] sm:$0xff]
        %v413 = vld [vmem:[#allocation2 + $0xf2] sm:$0xff]
        %v414 = vld [vmem:[#allocation2 + $0xfa] sm:$0xff]
        %v415 = vld [vmem:[#allocation2 + $0x10a] sm:$0xff]
        %v416 = vld [vmem:[#allocation2 + $0x112] sm:$0xff]
        %v417 = vld [vmem:[#allocation2 + $0x122] sm:$0xff]
        %v418 = vld [vmem:[#allocation2 + $0x12a] sm:$0xff]
        %v419 = vld [vmem:[#allocation2 + $0x13a] sm:$0xff]
        %v420 = vld [vmem:[#allocation2 + $0x142] sm:$0xff]
        %v421 = vld [vmem:[#allocation2 + $0x152] sm:$0xff]
        %v422 = vld [vmem:[#allocation2 + $0x15a] sm:$0xff]
        %v423 = vld [vmem:[#allocation2 + $0x16a] sm:$0xff]
        %v424 = vld [vmem:[#allocation2 + $0x172] sm:$0xff]
        %v425 = vld [vmem:[%s296] sm:$0xff]
        %v426 = vld [vmem:[%s296 + $0x8] sm:$0xff]
        %v427 = vld [vmem:[%s296 + $0x18] sm:$0xff]
        %v428 = vld [vmem:[%s296 + $0x20] sm:$0xff]
        %v429 = vld [vmem:[%s296 + $0x30] sm:$0xff]
        %v430 = vld [vmem:[%s296 + $0x38] sm:$0xff]
        %v431 = vld [vmem:[%s296 + $0x48] sm:$0xff]
        %v432 = vld [vmem:[%s296 + $0x50] sm:$0xff]
        %v433 = vld [vmem:[%s296 + $0x60] sm:$0xff]
        %v434 = vld [vmem:[%s296 + $0x68] sm:$0xff]
        %v435 = vld [vmem:[%s296 + $0x78] sm:$0xff]
        %v436 = vld [vmem:[%s296 + $0x80] sm:$0xff]
        %v437 = vld [vmem:[%s296 + $0x90] sm:$0xff]
        %v438 = vld [vmem:[%s296 + $0x98] sm:$0xff]
        %v439 = vld [vmem:[%s296 + $0xa8] sm:$0xff]
        %v440 = vld [vmem:[%s296 + $0xb0] sm:$0xff]
        %v441 = vld [vmem:[%s296 + $0xc0] sm:$0xff]
        %v442 = vld [vmem:[%s296 + $0xc8] sm:$0xff]
        %v443 = vld [vmem:[%s296 + $0xd8] sm:$0xff]
        %v444 = vld [vmem:[%s296 + $0xe0] sm:$0xff]
        %v445 = vld [vmem:[%s296 + $0xf0] sm:$0xff]
        %v446 = vld [vmem:[%s296 + $0xf8] sm:$0xff]
        %v447 = vld [vmem:[%s296 + $0x108] sm:$0xff]
        %v448 = vld [vmem:[%s296 + $0x110] sm:$0xff]
        %v449 = vld [vmem:[%s296 + $0x120] sm:$0xff]
        %v450 = vld [vmem:[%s296 + $0x128] sm:$0xff]
        %v451 = vld [vmem:[%s296 + $0x138] sm:$0xff]
        %v452 = vld [vmem:[%s296 + $0x140] sm:$0xff]
        %v453 = vld [vmem:[%s296 + $0x150] sm:$0xff]
        %v454 = vld [vmem:[%s296 + $0x158] sm:$0xff]
        %v455 = vld [vmem:[%s296 + $0x168] sm:$0xff]
        %v456 = vld [vmem:[%s296 + $0x170] sm:$0xff]
        %v457 = vld [vmem:[%s296 + $0x1] sm:$0xff]
        %v458 = vld [vmem:[%s296 + $0x9] sm:$0xff]
        %v459 = vld [vmem:[%s296 + $0x19] sm:$0xff]
        %v460 = vld [vmem:[%s296 + $0x21] sm:$0xff]
        %v461 = vld [vmem:[%s296 + $0x31] sm:$0xff]
        %v462 = vld [vmem:[%s296 + $0x39] sm:$0xff]
        %v463 = vld [vmem:[%s296 + $0x49] sm:$0xff]
        %v464 = vld [vmem:[%s296 + $0x51] sm:$0xff]
        %v465 = vld [vmem:[%s296 + $0x61] sm:$0xff]
        %v466 = vld [vmem:[%s296 + $0x69] sm:$0xff]
        %v467 = vld [vmem:[%s296 + $0x79] sm:$0xff]
        %v468 = vld [vmem:[%s296 + $0x81] sm:$0xff]
        %v469 = vld [vmem:[%s296 + $0x91] sm:$0xff]
        %v470 = vld [vmem:[%s296 + $0x99] sm:$0xff]
        %v471 = vld [vmem:[%s296 + $0xa9] sm:$0xff]
        %v472 = vld [vmem:[%s296 + $0xb1] sm:$0xff]
        %v473 = vld [vmem:[%s296 + $0xc1] sm:$0xff]
        %v474 = vld [vmem:[%s296 + $0xc9] sm:$0xff]
        %v475 = vld [vmem:[%s296 + $0xd9] sm:$0xff]
        %v476 = vld [vmem:[%s296 + $0xe1] sm:$0xff]
        %v477 = vld [vmem:[%s296 + $0xf1] sm:$0xff]
        %v478 = vld [vmem:[%s296 + $0xf9] sm:$0xff]
        %v479 = vld [vmem:[%s296 + $0x109] sm:$0xff]
        %v480 = vld [vmem:[%s296 + $0x111] sm:$0xff]
        %v481 = vld [vmem:[%s296 + $0x121] sm:$0xff]
        %v482 = vld [vmem:[%s296 + $0x129] sm:$0xff]
        %v483 = vld [vmem:[%s296 + $0x139] sm:$0xff]
        %v484 = vld [vmem:[%s296 + $0x141] sm:$0xff]
        %v485 = vld [vmem:[%s296 + $0x151] sm:$0xff]
        %v486 = vld [vmem:[%s296 + $0x159] sm:$0xff]
        %v487 = vld [vmem:[%s296 + $0x169] sm:$0xff]
        %v488 = vld [vmem:[%s296 + $0x171] sm:$0xff]
        %v489 = vld [vmem:[%s296 + $0x2] sm:$0xff]
        %v490 = vld [vmem:[%s296 + $0xa] sm:$0xff]
        %v491 = vld [vmem:[%s296 + $0x1a] sm:$0xff]
        %v492 = vld [vmem:[%s296 + $0x22] sm:$0xff]
        %v493 = vld [vmem:[%s296 + $0x32] sm:$0xff]
        %v494 = vld [vmem:[%s296 + $0x3a] sm:$0xff]
        %v495 = vld [vmem:[%s296 + $0x4a] sm:$0xff]
        %v496 = vld [vmem:[%s296 + $0x52] sm:$0xff]
        %v497 = vld [vmem:[%s296 + $0x62] sm:$0xff]
        %v498 = vld [vmem:[%s296 + $0x6a] sm:$0xff]
        %v499 = vld [vmem:[%s296 + $0x7a] sm:$0xff]
        %v500 = vld [vmem:[%s296 + $0x82] sm:$0xff]
        %v501 = vld [vmem:[%s296 + $0x92] sm:$0xff]
        %v502 = vld [vmem:[%s296 + $0x9a] sm:$0xff]
        %v503 = vld [vmem:[%s296 + $0xaa] sm:$0xff]
        %v504 = vld [vmem:[%s296 + $0xb2] sm:$0xff]
        %v505 = vld [vmem:[%s296 + $0xc2] sm:$0xff]
        %v506 = vld [vmem:[%s296 + $0xca] sm:$0xff]
        %v507 = vld [vmem:[%s296 + $0xda] sm:$0xff]
        %v508 = vld [vmem:[%s296 + $0xe2] sm:$0xff]
        %v509 = vld [vmem:[%s296 + $0xf2] sm:$0xff]
        %v510 = vld [vmem:[%s296 + $0xfa] sm:$0xff]
        %v511 = vld [vmem:[%s296 + $0x10a] sm:$0xff]
        %v512 = vld [vmem:[%s296 + $0x112] sm:$0xff]
        %v513 = vld [vmem:[%s296 + $0x122] sm:$0xff]
        %v514 = vld [vmem:[%s296 + $0x12a] sm:$0xff]
        %v515 = vld [vmem:[%s296 + $0x13a] sm:$0xff]
        %v516 = vld [vmem:[%s296 + $0x142] sm:$0xff]
        %v517 = vld [vmem:[%s296 + $0x152] sm:$0xff]
        %v518 = vld [vmem:[%s296 + $0x15a] sm:$0xff]
        %v519 = vld [vmem:[%s296 + $0x16a] sm:$0xff]
        %v520 = vld [vmem:[%s296 + $0x172] sm:$0xff]
        %s521 = scalar_lea.vmem [#allocation2], 48
        %v522 = vld [vmem:[%s521] sm:$0xff]
        %v523 = vld [vmem:[%s521 + $0x8] sm:$0xff]
        %v524 = vld [vmem:[%s521 + $0x18] sm:$0xff]
        %v525 = vld [vmem:[%s521 + $0x20] sm:$0xff]
        %v526 = vld [vmem:[%s521 + $0x30] sm:$0xff]
        %v527 = vld [vmem:[%s521 + $0x38] sm:$0xff]
        %v528 = vld [vmem:[%s521 + $0x48] sm:$0xff]
        %v529 = vld [vmem:[%s521 + $0x50] sm:$0xff]
        %v530 = vld [vmem:[%s521 + $0x60] sm:$0xff]
        %v531 = vld [vmem:[%s521 + $0x68] sm:$0xff]
        %v532 = vld [vmem:[%s521 + $0x78] sm:$0xff]
        %v533 = vld [vmem:[%s521 + $0x80] sm:$0xff]
        %v534 = vld [vmem:[%s521 + $0x90] sm:$0xff]
        %v535 = vld [vmem:[%s521 + $0x98] sm:$0xff]
        %v536 = vld [vmem:[%s521 + $0xa8] sm:$0xff]
        %v537 = vld [vmem:[%s521 + $0xb0] sm:$0xff]
        %v538 = vld [vmem:[%s521 + $0xc0] sm:$0xff]
        %v539 = vld [vmem:[%s521 + $0xc8] sm:$0xff]
        %v540 = vld [vmem:[%s521 + $0xd8] sm:$0xff]
        %v541 = vld [vmem:[%s521 + $0xe0] sm:$0xff]
        %v542 = vld [vmem:[%s521 + $0xf0] sm:$0xff]
        %v543 = vld [vmem:[%s521 + $0xf8] sm:$0xff]
        %v544 = vld [vmem:[%s521 + $0x108] sm:$0xff]
        %v545 = vld [vmem:[%s521 + $0x110] sm:$0xff]
        %v546 = vld [vmem:[%s521 + $0x120] sm:$0xff]
        %v547 = vld [vmem:[%s521 + $0x128] sm:$0xff]
        %v548 = vld [vmem:[%s521 + $0x138] sm:$0xff]
        %v549 = vld [vmem:[%s521 + $0x140] sm:$0xff]
        %v550 = vld [vmem:[%s521 + $0x150] sm:$0xff]
        %v551 = vld [vmem:[%s521 + $0x158] sm:$0xff]
        %v552 = vld [vmem:[%s521 + $0x168] sm:$0xff]
        %v553 = vld [vmem:[%s521 + $0x170] sm:$0xff]
        %v554 = vld [vmem:[%s521 + $0x1] sm:$0xff]
        %v555 = vld [vmem:[%s521 + $0x9] sm:$0xff]
        %v556 = vld [vmem:[%s521 + $0x19] sm:$0xff]
        %v557 = vld [vmem:[%s521 + $0x21] sm:$0xff]
        %v558 = vld [vmem:[%s521 + $0x31] sm:$0xff]
        %v559 = vld [vmem:[%s521 + $0x39] sm:$0xff]
        %v560 = vld [vmem:[%s521 + $0x49] sm:$0xff]
        %v561 = vld [vmem:[%s521 + $0x51] sm:$0xff]
        %v562 = vld [vmem:[%s521 + $0x61] sm:$0xff]
        %v563 = vld [vmem:[%s521 + $0x69] sm:$0xff]
        %v564 = vld [vmem:[%s521 + $0x79] sm:$0xff]
        %v565 = vld [vmem:[%s521 + $0x81] sm:$0xff]
        %v566 = vld [vmem:[%s521 + $0x91] sm:$0xff]
        %v567 = vld [vmem:[%s521 + $0x99] sm:$0xff]
        %v568 = vld [vmem:[%s521 + $0xa9] sm:$0xff]
        %v569 = vld [vmem:[%s521 + $0xb1] sm:$0xff]
        %v570 = vld [vmem:[%s521 + $0xc1] sm:$0xff]
        %v571 = vld [vmem:[%s521 + $0xc9] sm:$0xff]
        %v572 = vld [vmem:[%s521 + $0xd9] sm:$0xff]
        %v573 = vld [vmem:[%s521 + $0xe1] sm:$0xff]
        %v574 = vld [vmem:[%s521 + $0xf1] sm:$0xff]
        %v575 = vld [vmem:[%s521 + $0xf9] sm:$0xff]
        %v576 = vld [vmem:[%s521 + $0x109] sm:$0xff]
        %v577 = vld [vmem:[%s521 + $0x111] sm:$0xff]
        %v578 = vld [vmem:[%s521 + $0x121] sm:$0xff]
        %v579 = vld [vmem:[%s521 + $0x129] sm:$0xff]
        %v580 = vld [vmem:[%s521 + $0x139] sm:$0xff]
        %v581 = vld [vmem:[%s521 + $0x141] sm:$0xff]
        %v582 = vld [vmem:[%s521 + $0x151] sm:$0xff]
        %v583 = vld [vmem:[%s521 + $0x159] sm:$0xff]
        %v584 = vld [vmem:[%s521 + $0x169] sm:$0xff]
        %v585 = vld [vmem:[%s521 + $0x171] sm:$0xff]
        %v586 = vld [vmem:[%s521 + $0x2] sm:$0xff]
        %v587 = vld [vmem:[%s521 + $0xa] sm:$0xff]
        %v588 = vld [vmem:[%s521 + $0x1a] sm:$0xff]
        %v589 = vld [vmem:[%s521 + $0x22] sm:$0xff]
        %v590 = vld [vmem:[%s521 + $0x32] sm:$0xff]
        %v591 = vld [vmem:[%s521 + $0x3a] sm:$0xff]
        %v592 = vld [vmem:[%s521 + $0x4a] sm:$0xff]
        %v593 = vld [vmem:[%s521 + $0x52] sm:$0xff]
        %v594 = vld [vmem:[%s521 + $0x62] sm:$0xff]
        %v595 = vld [vmem:[%s521 + $0x6a] sm:$0xff]
        %v596 = vld [vmem:[%s521 + $0x7a] sm:$0xff]
        %v597 = vld [vmem:[%s521 + $0x82] sm:$0xff]
        %v598 = vld [vmem:[%s521 + $0x92] sm:$0xff]
        %v599 = vld [vmem:[%s521 + $0x9a] sm:$0xff]
        %v600 = vld [vmem:[%s521 + $0xaa] sm:$0xff]
        %v601 = vld [vmem:[%s521 + $0xb2] sm:$0xff]
        %v602 = vld [vmem:[%s521 + $0xc2] sm:$0xff]
        %v603 = vld [vmem:[%s521 + $0xca] sm:$0xff]
        %v604 = vld [vmem:[%s521 + $0xda] sm:$0xff]
        %v605 = vld [vmem:[%s521 + $0xe2] sm:$0xff]
        %v606 = vld [vmem:[%s521 + $0xf2] sm:$0xff]
        %v607 = vld [vmem:[%s521 + $0xfa] sm:$0xff]
        %v608 = vld [vmem:[%s521 + $0x10a] sm:$0xff]
        %v609 = vld [vmem:[%s521 + $0x112] sm:$0xff]
        %v610 = vld [vmem:[%s521 + $0x122] sm:$0xff]
        %v611 = vld [vmem:[%s521 + $0x12a] sm:$0xff]
        %v612 = vld [vmem:[%s521 + $0x13a] sm:$0xff]
        %v613 = vld [vmem:[%s521 + $0x142] sm:$0xff]
        %v614 = vld [vmem:[%s521 + $0x152] sm:$0xff]
        %v615 = vld [vmem:[%s521 + $0x15a] sm:$0xff]
        %v616 = vld [vmem:[%s521 + $0x16a] sm:$0xff]
        %v617 = vld [vmem:[%s521 + $0x172] sm:$0xff]
        %650 = vrot.lane.b32.xlu0 %v361, 4
        %v651 = vpop.permute.xlu0 %650
        %652 = vrot.lane.b32.xlu0 %v362, 4
        %v653 = vpop.permute.xlu0 %652
        %654 = vrot.lane.b32.xlu0 %v363, 4
        %v655 = vpop.permute.xlu0 %654
        %656 = vrot.lane.b32.xlu0 %v364, 4
        %v657 = vpop.permute.xlu0 %656
        %658 = vrot.lane.b32.xlu0 %v365, 4
        %v659 = vpop.permute.xlu0 %658
        %660 = vrot.lane.b32.xlu0 %v366, 4
        %v661 = vpop.permute.xlu0 %660
        %662 = vrot.lane.b32.xlu0 %v367, 4
        %v663 = vpop.permute.xlu0 %662
        %664 = vrot.lane.b32.xlu0 %v368, 4
        %v665 = vpop.permute.xlu0 %664
        %666 = vrot.lane.b32.xlu0 %v369, 4
        %v667 = vpop.permute.xlu0 %666
        %668 = vrot.lane.b32.xlu0 %v370, 4
        %v669 = vpop.permute.xlu0 %668
        %670 = vrot.lane.b32.xlu0 %v371, 4
        %v671 = vpop.permute.xlu0 %670
        %672 = vrot.lane.b32.xlu0 %v372, 4
        %v673 = vpop.permute.xlu0 %672
        %674 = vrot.lane.b32.xlu0 %v373, 4
        %v675 = vpop.permute.xlu0 %674
        %676 = vrot.lane.b32.xlu0 %v374, 4
        %v677 = vpop.permute.xlu0 %676
        %678 = vrot.lane.b32.xlu0 %v375, 4
        %v679 = vpop.permute.xlu0 %678
        %680 = vrot.lane.b32.xlu0 %v376, 4
        %v681 = vpop.permute.xlu0 %680
        %682 = vrot.lane.b32.xlu0 %v377, 4
        %v683 = vpop.permute.xlu0 %682
        %684 = vrot.lane.b32.xlu0 %v378, 4
        %v685 = vpop.permute.xlu0 %684
        %686 = vrot.lane.b32.xlu0 %v379, 4
        %v687 = vpop.permute.xlu0 %686
        %688 = vrot.lane.b32.xlu0 %v380, 4
        %v689 = vpop.permute.xlu0 %688
        %690 = vrot.lane.b32.xlu0 %v381, 4
        %v691 = vpop.permute.xlu0 %690
        %692 = vrot.lane.b32.xlu0 %v382, 4
        %v693 = vpop.permute.xlu0 %692
        %694 = vrot.lane.b32.xlu0 %v383, 4
        %v695 = vpop.permute.xlu0 %694
        %696 = vrot.lane.b32.xlu0 %v384, 4
        %v697 = vpop.permute.xlu0 %696
        %698 = vrot.lane.b32.xlu0 %v385, 4
        %v699 = vpop.permute.xlu0 %698
        %700 = vrot.lane.b32.xlu0 %v386, 4
        %v701 = vpop.permute.xlu0 %700
        %702 = vrot.lane.b32.xlu0 %v387, 4
        %v703 = vpop.permute.xlu0 %702
        %704 = vrot.lane.b32.xlu0 %v388, 4
        %v705 = vpop.permute.xlu0 %704
        %706 = vrot.lane.b32.xlu0 %v389, 4
        %v707 = vpop.permute.xlu0 %706
        %708 = vrot.lane.b32.xlu0 %v390, 4
        %v709 = vpop.permute.xlu0 %708
        %710 = vrot.lane.b32.xlu0 %v391, 4
        %v711 = vpop.permute.xlu0 %710
        %712 = vrot.lane.b32.xlu0 %v392, 4
        %v713 = vpop.permute.xlu0 %712
        %778 = vrot.lane.b32.xlu0 %v393, 8
        %v779 = vpop.permute.xlu0 %778
        %780 = vrot.lane.b32.xlu0 %v394, 8
        %v781 = vpop.permute.xlu0 %780
        %782 = vrot.lane.b32.xlu0 %v395, 8
        %v783 = vpop.permute.xlu0 %782
        %784 = vrot.lane.b32.xlu0 %v396, 8
        %v785 = vpop.permute.xlu0 %784
        %786 = vrot.lane.b32.xlu0 %v397, 8
        %v787 = vpop.permute.xlu0 %786
        %788 = vrot.lane.b32.xlu0 %v398, 8
        %v789 = vpop.permute.xlu0 %788
        %790 = vrot.lane.b32.xlu0 %v399, 8
        %v791 = vpop.permute.xlu0 %790
        %792 = vrot.lane.b32.xlu0 %v400, 8
        %v793 = vpop.permute.xlu0 %792
        %794 = vrot.lane.b32.xlu0 %v401, 8
        %v795 = vpop.permute.xlu0 %794
        %796 = vrot.lane.b32.xlu0 %v402, 8
        %v797 = vpop.permute.xlu0 %796
        %798 = vrot.lane.b32.xlu0 %v403, 8
        %v799 = vpop.permute.xlu0 %798
        %800 = vrot.lane.b32.xlu0 %v404, 8
        %v801 = vpop.permute.xlu0 %800
        %802 = vrot.lane.b32.xlu0 %v405, 8
        %v803 = vpop.permute.xlu0 %802
        %804 = vrot.lane.b32.xlu0 %v406, 8
        %v805 = vpop.permute.xlu0 %804
        %806 = vrot.lane.b32.xlu0 %v407, 8
        %v807 = vpop.permute.xlu0 %806
        %808 = vrot.lane.b32.xlu0 %v408, 8
        %v809 = vpop.permute.xlu0 %808
        %810 = vrot.lane.b32.xlu0 %v409, 8
        %v811 = vpop.permute.xlu0 %810
        %812 = vrot.lane.b32.xlu0 %v410, 8
        %v813 = vpop.permute.xlu0 %812
        %814 = vrot.lane.b32.xlu0 %v411, 8
        %v815 = vpop.permute.xlu0 %814
        %816 = vrot.lane.b32.xlu0 %v412, 8
        %v817 = vpop.permute.xlu0 %816
        %818 = vrot.lane.b32.xlu0 %v413, 8
        %v819 = vpop.permute.xlu0 %818
        %820 = vrot.lane.b32.xlu0 %v414, 8
        %v821 = vpop.permute.xlu0 %820
        %822 = vrot.lane.b32.xlu0 %v415, 8
        %v823 = vpop.permute.xlu0 %822
        %824 = vrot.lane.b32.xlu0 %v416, 8
        %v825 = vpop.permute.xlu0 %824
        %826 = vrot.lane.b32.xlu0 %v417, 8
        %v827 = vpop.permute.xlu0 %826
        %828 = vrot.lane.b32.xlu0 %v418, 8
        %v829 = vpop.permute.xlu0 %828
        %830 = vrot.lane.b32.xlu0 %v419, 8
        %v831 = vpop.permute.xlu0 %830
        %832 = vrot.lane.b32.xlu0 %v420, 8
        %v833 = vpop.permute.xlu0 %832
        %834 = vrot.lane.b32.xlu0 %v421, 8
        %v835 = vpop.permute.xlu0 %834
        %836 = vrot.lane.b32.xlu0 %v422, 8
        %v837 = vpop.permute.xlu0 %836
        %838 = vrot.lane.b32.xlu0 %v423, 8
        %v839 = vpop.permute.xlu0 %838
        %840 = vrot.lane.b32.xlu0 %v424, 8
        %v841 = vpop.permute.xlu0 %840
        %906 = vrot.lane.b32.xlu0 %v425, 12
        %v907 = vpop.permute.xlu0 %906
        %908 = vrot.lane.b32.xlu0 %v426, 12
        %v909 = vpop.permute.xlu0 %908
        %910 = vrot.lane.b32.xlu0 %v427, 12
        %v911 = vpop.permute.xlu0 %910
        %912 = vrot.lane.b32.xlu0 %v428, 12
        %v913 = vpop.permute.xlu0 %912
        %914 = vrot.lane.b32.xlu0 %v429, 12
        %v915 = vpop.permute.xlu0 %914
        %916 = vrot.lane.b32.xlu0 %v430, 12
        %v917 = vpop.permute.xlu0 %916
        %918 = vrot.lane.b32.xlu0 %v431, 12
        %v919 = vpop.permute.xlu0 %918
        %920 = vrot.lane.b32.xlu0 %v432, 12
        %v921 = vpop.permute.xlu0 %920
        %922 = vrot.lane.b32.xlu0 %v433, 12
        %v923 = vpop.permute.xlu0 %922
        %924 = vrot.lane.b32.xlu0 %v434, 12
        %v925 = vpop.permute.xlu0 %924
        %926 = vrot.lane.b32.xlu0 %v435, 12
        %v927 = vpop.permute.xlu0 %926
        %928 = vrot.lane.b32.xlu0 %v436, 12
        %v929 = vpop.permute.xlu0 %928
        %930 = vrot.lane.b32.xlu0 %v437, 12
        %v931 = vpop.permute.xlu0 %930
        %932 = vrot.lane.b32.xlu0 %v438, 12
        %v933 = vpop.permute.xlu0 %932
        %934 = vrot.lane.b32.xlu0 %v439, 12
        %v935 = vpop.permute.xlu0 %934
        %936 = vrot.lane.b32.xlu0 %v440, 12
        %v937 = vpop.permute.xlu0 %936
        %938 = vrot.lane.b32.xlu0 %v441, 12
        %v939 = vpop.permute.xlu0 %938
        %940 = vrot.lane.b32.xlu0 %v442, 12
        %v941 = vpop.permute.xlu0 %940
        %942 = vrot.lane.b32.xlu0 %v443, 12
        %v943 = vpop.permute.xlu0 %942
        %944 = vrot.lane.b32.xlu0 %v444, 12
        %v945 = vpop.permute.xlu0 %944
        %946 = vrot.lane.b32.xlu0 %v445, 12
        %v947 = vpop.permute.xlu0 %946
        %948 = vrot.lane.b32.xlu0 %v446, 12
        %v949 = vpop.permute.xlu0 %948
        %950 = vrot.lane.b32.xlu0 %v447, 12
        %v951 = vpop.permute.xlu0 %950
        %952 = vrot.lane.b32.xlu0 %v448, 12
        %v953 = vpop.permute.xlu0 %952
        %954 = vrot.lane.b32.xlu0 %v449, 12
        %v955 = vpop.permute.xlu0 %954
        %956 = vrot.lane.b32.xlu0 %v450, 12
        %v957 = vpop.permute.xlu0 %956
        %958 = vrot.lane.b32.xlu0 %v451, 12
        %v959 = vpop.permute.xlu0 %958
        %960 = vrot.lane.b32.xlu0 %v452, 12
        %v961 = vpop.permute.xlu0 %960
        %962 = vrot.lane.b32.xlu0 %v453, 12
        %v963 = vpop.permute.xlu0 %962
        %964 = vrot.lane.b32.xlu0 %v454, 12
        %v965 = vpop.permute.xlu0 %964
        %966 = vrot.lane.b32.xlu0 %v455, 12
        %v967 = vpop.permute.xlu0 %966
        %968 = vrot.lane.b32.xlu0 %v456, 12
        %v969 = vpop.permute.xlu0 %968
        %1034 = vrot.lane.b32.xlu0 %v457, 16
        %v1035 = vpop.permute.xlu0 %1034
        %1036 = vrot.lane.b32.xlu0 %v458, 16
        %v1037 = vpop.permute.xlu0 %1036
        %1038 = vrot.lane.b32.xlu0 %v459, 16
        %v1039 = vpop.permute.xlu0 %1038
        %1040 = vrot.lane.b32.xlu0 %v460, 16
        %v1041 = vpop.permute.xlu0 %1040
        %1042 = vrot.lane.b32.xlu0 %v461, 16
        %v1043 = vpop.permute.xlu0 %1042
        %1044 = vrot.lane.b32.xlu0 %v462, 16
        %v1045 = vpop.permute.xlu0 %1044
        %1046 = vrot.lane.b32.xlu0 %v463, 16
        %v1047 = vpop.permute.xlu0 %1046
        %1048 = vrot.lane.b32.xlu0 %v464, 16
        %v1049 = vpop.permute.xlu0 %1048
        %1050 = vrot.lane.b32.xlu0 %v465, 16
        %v1051 = vpop.permute.xlu0 %1050
        %1052 = vrot.lane.b32.xlu0 %v466, 16
        %v1053 = vpop.permute.xlu0 %1052
        %1054 = vrot.lane.b32.xlu0 %v467, 16
        %v1055 = vpop.permute.xlu0 %1054
        %1056 = vrot.lane.b32.xlu0 %v468, 16
        %v1057 = vpop.permute.xlu0 %1056
        %1058 = vrot.lane.b32.xlu0 %v469, 16
        %v1059 = vpop.permute.xlu0 %1058
        %1060 = vrot.lane.b32.xlu0 %v470, 16
        %v1061 = vpop.permute.xlu0 %1060
        %1062 = vrot.lane.b32.xlu0 %v471, 16
        %v1063 = vpop.permute.xlu0 %1062
        %1064 = vrot.lane.b32.xlu0 %v472, 16
        %v1065 = vpop.permute.xlu0 %1064
        %1066 = vrot.lane.b32.xlu0 %v473, 16
        %v1067 = vpop.permute.xlu0 %1066
        %1068 = vrot.lane.b32.xlu0 %v474, 16
        %v1069 = vpop.permute.xlu0 %1068
        %1070 = vrot.lane.b32.xlu0 %v475, 16
        %v1071 = vpop.permute.xlu0 %1070
        %1072 = vrot.lane.b32.xlu0 %v476, 16
        %v1073 = vpop.permute.xlu0 %1072
        %1074 = vrot.lane.b32.xlu0 %v477, 16
        %v1075 = vpop.permute.xlu0 %1074
        %1076 = vrot.lane.b32.xlu0 %v478, 16
        %v1077 = vpop.permute.xlu0 %1076
        %1078 = vrot.lane.b32.xlu0 %v479, 16
        %v1079 = vpop.permute.xlu0 %1078
        %1080 = vrot.lane.b32.xlu0 %v480, 16
        %v1081 = vpop.permute.xlu0 %1080
        %1082 = vrot.lane.b32.xlu0 %v481, 16
        %v1083 = vpop.permute.xlu0 %1082
        %1084 = vrot.lane.b32.xlu0 %v482, 16
        %v1085 = vpop.permute.xlu0 %1084
        %1086 = vrot.lane.b32.xlu0 %v483, 16
        %v1087 = vpop.permute.xlu0 %1086
        %1088 = vrot.lane.b32.xlu0 %v484, 16
        %v1089 = vpop.permute.xlu0 %1088
        %1090 = vrot.lane.b32.xlu0 %v485, 16
        %v1091 = vpop.permute.xlu0 %1090
        %1092 = vrot.lane.b32.xlu0 %v486, 16
        %v1093 = vpop.permute.xlu0 %1092
        %1094 = vrot.lane.b32.xlu0 %v487, 16
        %v1095 = vpop.permute.xlu0 %1094
        %1096 = vrot.lane.b32.xlu0 %v488, 16
        %v1097 = vpop.permute.xlu0 %1096
        %1162 = vrot.lane.b32.xlu0 %v489, 20
        %v1163 = vpop.permute.xlu0 %1162
        %1164 = vrot.lane.b32.xlu0 %v490, 20
        %v1165 = vpop.permute.xlu0 %1164
        %1166 = vrot.lane.b32.xlu0 %v491, 20
        %v1167 = vpop.permute.xlu0 %1166
        %1168 = vrot.lane.b32.xlu0 %v492, 20
        %v1169 = vpop.permute.xlu0 %1168
        %1170 = vrot.lane.b32.xlu0 %v493, 20
        %v1171 = vpop.permute.xlu0 %1170
        %1172 = vrot.lane.b32.xlu0 %v494, 20
        %v1173 = vpop.permute.xlu0 %1172
        %1174 = vrot.lane.b32.xlu0 %v495, 20
        %v1175 = vpop.permute.xlu0 %1174
        %1176 = vrot.lane.b32.xlu0 %v496, 20
        %v1177 = vpop.permute.xlu0 %1176
        %1178 = vrot.lane.b32.xlu0 %v497, 20
        %v1179 = vpop.permute.xlu0 %1178
        %1180 = vrot.lane.b32.xlu0 %v498, 20
        %v1181 = vpop.permute.xlu0 %1180
        %1182 = vrot.lane.b32.xlu0 %v499, 20
        %v1183 = vpop.permute.xlu0 %1182
        %1184 = vrot.lane.b32.xlu0 %v500, 20
        %v1185 = vpop.permute.xlu0 %1184
        %1186 = vrot.lane.b32.xlu0 %v501, 20
        %v1187 = vpop.permute.xlu0 %1186
        %1188 = vrot.lane.b32.xlu0 %v502, 20
        %v1189 = vpop.permute.xlu0 %1188
        %1190 = vrot.lane.b32.xlu0 %v503, 20
        %v1191 = vpop.permute.xlu0 %1190
        %1192 = vrot.lane.b32.xlu0 %v504, 20
        %v1193 = vpop.permute.xlu0 %1192
        %1194 = vrot.lane.b32.xlu0 %v505, 20
        %v1195 = vpop.permute.xlu0 %1194
        %1196 = vrot.lane.b32.xlu0 %v506, 20
        %v1197 = vpop.permute.xlu0 %1196
        %1198 = vrot.lane.b32.xlu0 %v507, 20
        %v1199 = vpop.permute.xlu0 %1198
        %1200 = vrot.lane.b32.xlu0 %v508, 20
        %v1201 = vpop.permute.xlu0 %1200
        %1202 = vrot.lane.b32.xlu0 %v509, 20
        %v1203 = vpop.permute.xlu0 %1202
        %1204 = vrot.lane.b32.xlu0 %v510, 20
        %v1205 = vpop.permute.xlu0 %1204
        %1206 = vrot.lane.b32.xlu0 %v511, 20
        %v1207 = vpop.permute.xlu0 %1206
        %1208 = vrot.lane.b32.xlu0 %v512, 20
        %v1209 = vpop.permute.xlu0 %1208
        %1210 = vrot.lane.b32.xlu0 %v513, 20
        %v1211 = vpop.permute.xlu0 %1210
        %1212 = vrot.lane.b32.xlu0 %v514, 20
        %v1213 = vpop.permute.xlu0 %1212
        %1214 = vrot.lane.b32.xlu0 %v515, 20
        %v1215 = vpop.permute.xlu0 %1214
        %1216 = vrot.lane.b32.xlu0 %v516, 20
        %v1217 = vpop.permute.xlu0 %1216
        %1218 = vrot.lane.b32.xlu0 %v517, 20
        %v1219 = vpop.permute.xlu0 %1218
        %1220 = vrot.lane.b32.xlu0 %v518, 20
        %v1221 = vpop.permute.xlu0 %1220
        %1222 = vrot.lane.b32.xlu0 %v519, 20
        %v1223 = vpop.permute.xlu0 %1222
        %1224 = vrot.lane.b32.xlu0 %v520, 20
        %v1225 = vpop.permute.xlu0 %1224
        %1290 = vrot.lane.b32.xlu0 %v522, 24
        %v1291 = vpop.permute.xlu0 %1290
        %1292 = vrot.lane.b32.xlu0 %v523, 24
        %v1293 = vpop.permute.xlu0 %1292
        %1294 = vrot.lane.b32.xlu0 %v524, 24
        %v1295 = vpop.permute.xlu0 %1294
        %1296 = vrot.lane.b32.xlu0 %v525, 24
        %v1297 = vpop.permute.xlu0 %1296
        %1298 = vrot.lane.b32.xlu0 %v526, 24
        %v1299 = vpop.permute.xlu0 %1298
        %1300 = vrot.lane.b32.xlu0 %v527, 24
        %v1301 = vpop.permute.xlu0 %1300
        %1302 = vrot.lane.b32.xlu0 %v528, 24
        %v1303 = vpop.permute.xlu0 %1302
        %1304 = vrot.lane.b32.xlu0 %v529, 24
        %v1305 = vpop.permute.xlu0 %1304
        %1306 = vrot.lane.b32.xlu0 %v530, 24
        %v1307 = vpop.permute.xlu0 %1306
        %1308 = vrot.lane.b32.xlu0 %v531, 24
        %v1309 = vpop.permute.xlu0 %1308
        %1310 = vrot.lane.b32.xlu0 %v532, 24
        %v1311 = vpop.permute.xlu0 %1310
        %1312 = vrot.lane.b32.xlu0 %v533, 24
        %v1313 = vpop.permute.xlu0 %1312
        %1314 = vrot.lane.b32.xlu0 %v534, 24
        %v1315 = vpop.permute.xlu0 %1314
        %1316 = vrot.lane.b32.xlu0 %v535, 24
        %v1317 = vpop.permute.xlu0 %1316
        %1318 = vrot.lane.b32.xlu0 %v536, 24
        %v1319 = vpop.permute.xlu0 %1318
        %1320 = vrot.lane.b32.xlu0 %v537, 24
        %v1321 = vpop.permute.xlu0 %1320
        %1322 = vrot.lane.b32.xlu0 %v538, 24
        %v1323 = vpop.permute.xlu0 %1322
        %1324 = vrot.lane.b32.xlu0 %v539, 24
        %v1325 = vpop.permute.xlu0 %1324
        %1326 = vrot.lane.b32.xlu0 %v540, 24
        %v1327 = vpop.permute.xlu0 %1326
        %1328 = vrot.lane.b32.xlu0 %v541, 24
        %v1329 = vpop.permute.xlu0 %1328
        %1330 = vrot.lane.b32.xlu0 %v542, 24
        %v1331 = vpop.permute.xlu0 %1330
        %1332 = vrot.lane.b32.xlu0 %v543, 24
        %v1333 = vpop.permute.xlu0 %1332
        %1334 = vrot.lane.b32.xlu0 %v544, 24
        %v1335 = vpop.permute.xlu0 %1334
        %1336 = vrot.lane.b32.xlu0 %v545, 24
        %v1337 = vpop.permute.xlu0 %1336
        %1338 = vrot.lane.b32.xlu0 %v546, 24
        %v1339 = vpop.permute.xlu0 %1338
        %1340 = vrot.lane.b32.xlu0 %v547, 24
        %v1341 = vpop.permute.xlu0 %1340
        %1342 = vrot.lane.b32.xlu0 %v548, 24
        %v1343 = vpop.permute.xlu0 %1342
        %1344 = vrot.lane.b32.xlu0 %v549, 24
        %v1345 = vpop.permute.xlu0 %1344
        %1346 = vrot.lane.b32.xlu0 %v550, 24
        %v1347 = vpop.permute.xlu0 %1346
        %1348 = vrot.lane.b32.xlu0 %v551, 24
        %v1349 = vpop.permute.xlu0 %1348
        %1350 = vrot.lane.b32.xlu0 %v552, 24
        %v1351 = vpop.permute.xlu0 %1350
        %1352 = vrot.lane.b32.xlu0 %v553, 24
        %v1353 = vpop.permute.xlu0 %1352
        %1418 = vrot.lane.b32.xlu0 %v554, 28
        %v1419 = vpop.permute.xlu0 %1418
        %1420 = vrot.lane.b32.xlu0 %v555, 28
        %v1421 = vpop.permute.xlu0 %1420
        %1422 = vrot.lane.b32.xlu0 %v556, 28
        %v1423 = vpop.permute.xlu0 %1422
        %1424 = vrot.lane.b32.xlu0 %v557, 28
        %v1425 = vpop.permute.xlu0 %1424
        %1426 = vrot.lane.b32.xlu0 %v558, 28
        %v1427 = vpop.permute.xlu0 %1426
        %1428 = vrot.lane.b32.xlu0 %v559, 28
        %v1429 = vpop.permute.xlu0 %1428
        %1430 = vrot.lane.b32.xlu0 %v560, 28
        %v1431 = vpop.permute.xlu0 %1430
        %1432 = vrot.lane.b32.xlu0 %v561, 28
        %v1433 = vpop.permute.xlu0 %1432
        %1434 = vrot.lane.b32.xlu0 %v562, 28
        %v1435 = vpop.permute.xlu0 %1434
        %1436 = vrot.lane.b32.xlu0 %v563, 28
        %v1437 = vpop.permute.xlu0 %1436
        %1438 = vrot.lane.b32.xlu0 %v564, 28
        %v1439 = vpop.permute.xlu0 %1438
        %1440 = vrot.lane.b32.xlu0 %v565, 28
        %v1441 = vpop.permute.xlu0 %1440
        %1442 = vrot.lane.b32.xlu0 %v566, 28
        %v1443 = vpop.permute.xlu0 %1442
        %1444 = vrot.lane.b32.xlu0 %v567, 28
        %v1445 = vpop.permute.xlu0 %1444
        %1446 = vrot.lane.b32.xlu0 %v568, 28
        %v1447 = vpop.permute.xlu0 %1446
        %1448 = vrot.lane.b32.xlu0 %v569, 28
        %v1449 = vpop.permute.xlu0 %1448
        %1450 = vrot.lane.b32.xlu0 %v570, 28
        %v1451 = vpop.permute.xlu0 %1450
        %1452 = vrot.lane.b32.xlu0 %v571, 28
        %v1453 = vpop.permute.xlu0 %1452
        %1454 = vrot.lane.b32.xlu0 %v572, 28
        %v1455 = vpop.permute.xlu0 %1454
        %1456 = vrot.lane.b32.xlu0 %v573, 28
        %v1457 = vpop.permute.xlu0 %1456
        %1458 = vrot.lane.b32.xlu0 %v574, 28
        %v1459 = vpop.permute.xlu0 %1458
        %1460 = vrot.lane.b32.xlu0 %v575, 28
        %v1461 = vpop.permute.xlu0 %1460
        %1462 = vrot.lane.b32.xlu0 %v576, 28
        %v1463 = vpop.permute.xlu0 %1462
        %1464 = vrot.lane.b32.xlu0 %v577, 28
        %v1465 = vpop.permute.xlu0 %1464
        %1466 = vrot.lane.b32.xlu0 %v578, 28
        %v1467 = vpop.permute.xlu0 %1466
        %1468 = vrot.lane.b32.xlu0 %v579, 28
        %v1469 = vpop.permute.xlu0 %1468
        %1470 = vrot.lane.b32.xlu0 %v580, 28
        %v1471 = vpop.permute.xlu0 %1470
        %1472 = vrot.lane.b32.xlu0 %v581, 28
        %v1473 = vpop.permute.xlu0 %1472
        %1474 = vrot.lane.b32.xlu0 %v582, 28
        %v1475 = vpop.permute.xlu0 %1474
        %1476 = vrot.lane.b32.xlu0 %v583, 28
        %v1477 = vpop.permute.xlu0 %1476
        %1478 = vrot.lane.b32.xlu0 %v584, 28
        %v1479 = vpop.permute.xlu0 %1478
        %1480 = vrot.lane.b32.xlu0 %v585, 28
        %v1481 = vpop.permute.xlu0 %1480
        %1546 = vrot.lane.b32.xlu0 %v586, 32
        %v1547 = vpop.permute.xlu0 %1546
        %1548 = vrot.lane.b32.xlu0 %v587, 32
        %v1549 = vpop.permute.xlu0 %1548
        %1550 = vrot.lane.b32.xlu0 %v588, 32
        %v1551 = vpop.permute.xlu0 %1550
        %1552 = vrot.lane.b32.xlu0 %v589, 32
        %v1553 = vpop.permute.xlu0 %1552
        %1554 = vrot.lane.b32.xlu0 %v590, 32
        %v1555 = vpop.permute.xlu0 %1554
        %1556 = vrot.lane.b32.xlu0 %v591, 32
        %v1557 = vpop.permute.xlu0 %1556
        %1558 = vrot.lane.b32.xlu0 %v592, 32
        %v1559 = vpop.permute.xlu0 %1558
        %1560 = vrot.lane.b32.xlu0 %v593, 32
        %v1561 = vpop.permute.xlu0 %1560
        %1562 = vrot.lane.b32.xlu0 %v594, 32
        %v1563 = vpop.permute.xlu0 %1562
        %1564 = vrot.lane.b32.xlu0 %v595, 32
        %v1565 = vpop.permute.xlu0 %1564
        %1566 = vrot.lane.b32.xlu0 %v596, 32
        %v1567 = vpop.permute.xlu0 %1566
        %1568 = vrot.lane.b32.xlu0 %v597, 32
        %v1569 = vpop.permute.xlu0 %1568
        %1570 = vrot.lane.b32.xlu0 %v598, 32
        %v1571 = vpop.permute.xlu0 %1570
        %1572 = vrot.lane.b32.xlu0 %v599, 32
        %v1573 = vpop.permute.xlu0 %1572
        %1574 = vrot.lane.b32.xlu0 %v600, 32
        %v1575 = vpop.permute.xlu0 %1574
        %1576 = vrot.lane.b32.xlu0 %v601, 32
        %v1577 = vpop.permute.xlu0 %1576
        %1578 = vrot.lane.b32.xlu0 %v602, 32
        %v1579 = vpop.permute.xlu0 %1578
        %1580 = vrot.lane.b32.xlu0 %v603, 32
        %v1581 = vpop.permute.xlu0 %1580
        %1582 = vrot.lane.b32.xlu0 %v604, 32
        %v1583 = vpop.permute.xlu0 %1582
        %1584 = vrot.lane.b32.xlu0 %v605, 32
        %v1585 = vpop.permute.xlu0 %1584
        %1586 = vrot.lane.b32.xlu0 %v606, 32
        %v1587 = vpop.permute.xlu0 %1586
        %1588 = vrot.lane.b32.xlu0 %v607, 32
        %v1589 = vpop.permute.xlu0 %1588
        %1590 = vrot.lane.b32.xlu0 %v608, 32
        %v1591 = vpop.permute.xlu0 %1590
        %1592 = vrot.lane.b32.xlu0 %v609, 32
        %v1593 = vpop.permute.xlu0 %1592
        %1594 = vrot.lane.b32.xlu0 %v610, 32
        %v1595 = vpop.permute.xlu0 %1594
        %1596 = vrot.lane.b32.xlu0 %v611, 32
        %v1597 = vpop.permute.xlu0 %1596
        %1598 = vrot.lane.b32.xlu0 %v612, 32
        %v1599 = vpop.permute.xlu0 %1598
        %1600 = vrot.lane.b32.xlu0 %v613, 32
        %v1601 = vpop.permute.xlu0 %1600
        %1602 = vrot.lane.b32.xlu0 %v614, 32
        %v1603 = vpop.permute.xlu0 %1602
        %1604 = vrot.lane.b32.xlu0 %v615, 32
        %v1605 = vpop.permute.xlu0 %1604
        %1606 = vrot.lane.b32.xlu0 %v616, 32
        %v1607 = vpop.permute.xlu0 %1606
        %1608 = vrot.lane.b32.xlu0 %v617, 32
        %v1609 = vpop.permute.xlu0 %1608
        %v1642 = vsel %vm208, %v329, %v651
        %v1643 = vsel %vm208, %v330, %v653
        %v1644 = vsel %vm208, %v331, %v655
        %v1645 = vsel %vm208, %v332, %v657
        %v1646 = vsel %vm208, %v333, %v659
        %v1647 = vsel %vm208, %v334, %v661
        %v1648 = vsel %vm208, %v335, %v663
        %v1649 = vsel %vm208, %v336, %v665
        %v1650 = vsel %vm208, %v337, %v667
        %v1651 = vsel %vm208, %v338, %v669
        %v1652 = vsel %vm208, %v339, %v671
        %v1653 = vsel %vm208, %v340, %v673
        %v1654 = vsel %vm208, %v341, %v675
        %v1655 = vsel %vm208, %v342, %v677
        %v1656 = vsel %vm208, %v343, %v679
        %v1657 = vsel %vm208, %v344, %v681
        %v1658 = vsel %vm208, %v345, %v683
        %v1659 = vsel %vm208, %v346, %v685
        %v1660 = vsel %vm208, %v347, %v687
        %v1661 = vsel %vm208, %v348, %v689
        %v1662 = vsel %vm208, %v349, %v691
        %v1663 = vsel %vm208, %v350, %v693
        %v1664 = vsel %vm208, %v351, %v695
        %v1665 = vsel %vm208, %v352, %v697
        %v1666 = vsel %vm208, %v353, %v699
        %v1667 = vsel %vm208, %v354, %v701
        %v1668 = vsel %vm208, %v355, %v703
        %v1669 = vsel %vm208, %v356, %v705
        %v1670 = vsel %vm208, %v357, %v707
        %v1671 = vsel %vm208, %v358, %v709
        %v1672 = vsel %vm208, %v359, %v711
        %v1673 = vsel %vm208, %v360, %v713
        %vm1674 = vcmask 64512
        %v1675 = vsel %vm1674, %v1642, %v779
        %v1676 = vsel %vm1674, %v1643, %v781
        %v1677 = vsel %vm1674, %v1644, %v783
        %v1678 = vsel %vm1674, %v1645, %v785
        %v1679 = vsel %vm1674, %v1646, %v787
        %v1680 = vsel %vm1674, %v1647, %v789
        %v1681 = vsel %vm1674, %v1648, %v791
        %v1682 = vsel %vm1674, %v1649, %v793
        %v1683 = vsel %vm1674, %v1650, %v795
        %v1684 = vsel %vm1674, %v1651, %v797
        %v1685 = vsel %vm1674, %v1652, %v799
        %v1686 = vsel %vm1674, %v1653, %v801
        %v1687 = vsel %vm1674, %v1654, %v803
        %v1688 = vsel %vm1674, %v1655, %v805
        %v1689 = vsel %vm1674, %v1656, %v807
        %v1690 = vsel %vm1674, %v1657, %v809
        %v1691 = vsel %vm1674, %v1658, %v811
        %v1692 = vsel %vm1674, %v1659, %v813
        %v1693 = vsel %vm1674, %v1660, %v815
        %v1694 = vsel %vm1674, %v1661, %v817
        %v1695 = vsel %vm1674, %v1662, %v819
        %v1696 = vsel %vm1674, %v1663, %v821
        %v1697 = vsel %vm1674, %v1664, %v823
        %v1698 = vsel %vm1674, %v1665, %v825
        %v1699 = vsel %vm1674, %v1666, %v827
        %v1700 = vsel %vm1674, %v1667, %v829
        %v1701 = vsel %vm1674, %v1668, %v831
        %v1702 = vsel %vm1674, %v1669, %v833
        %v1703 = vsel %vm1674, %v1670, %v835
        %v1704 = vsel %vm1674, %v1671, %v837
        %v1705 = vsel %vm1674, %v1672, %v839
        %v1706 = vsel %vm1674, %v1673, %v841
        %vm1707 = vcmask 97280
        %v1708 = vsel %vm1707, %v1675, %v907
        %v1709 = vsel %vm1707, %v1676, %v909
        %v1710 = vsel %vm1707, %v1677, %v911
        %v1711 = vsel %vm1707, %v1678, %v913
        %v1712 = vsel %vm1707, %v1679, %v915
        %v1713 = vsel %vm1707, %v1680, %v917
        %v1714 = vsel %vm1707, %v1681, %v919
        %v1715 = vsel %vm1707, %v1682, %v921
        %v1716 = vsel %vm1707, %v1683, %v923
        %v1717 = vsel %vm1707, %v1684, %v925
        %v1718 = vsel %vm1707, %v1685, %v927
        %v1719 = vsel %vm1707, %v1686, %v929
        %v1720 = vsel %vm1707, %v1687, %v931
        %v1721 = vsel %vm1707, %v1688, %v933
        %v1722 = vsel %vm1707, %v1689, %v935
        %v1723 = vsel %vm1707, %v1690, %v937
        %v1724 = vsel %vm1707, %v1691, %v939
        %v1725 = vsel %vm1707, %v1692, %v941
        %v1726 = vsel %vm1707, %v1693, %v943
        %v1727 = vsel %vm1707, %v1694, %v945
        %v1728 = vsel %vm1707, %v1695, %v947
        %v1729 = vsel %vm1707, %v1696, %v949
        %v1730 = vsel %vm1707, %v1697, %v951
        %v1731 = vsel %vm1707, %v1698, %v953
        %v1732 = vsel %vm1707, %v1699, %v955
        %v1733 = vsel %vm1707, %v1700, %v957
        %v1734 = vsel %vm1707, %v1701, %v959
        %v1735 = vsel %vm1707, %v1702, %v961
        %v1736 = vsel %vm1707, %v1703, %v963
        %v1737 = vsel %vm1707, %v1704, %v965
        %v1738 = vsel %vm1707, %v1705, %v967
        %v1739 = vsel %vm1707, %v1706, %v969
        %vm1740 = vcmask 130048
        %v1741 = vsel %vm1740, %v1708, %v1035
        %v1742 = vsel %vm1740, %v1709, %v1037
        %v1743 = vsel %vm1740, %v1710, %v1039
        %v1744 = vsel %vm1740, %v1711, %v1041
        %v1745 = vsel %vm1740, %v1712, %v1043
        %v1746 = vsel %vm1740, %v1713, %v1045
        %v1747 = vsel %vm1740, %v1714, %v1047
        %v1748 = vsel %vm1740, %v1715, %v1049
        %v1749 = vsel %vm1740, %v1716, %v1051
        %v1750 = vsel %vm1740, %v1717, %v1053
        %v1751 = vsel %vm1740, %v1718, %v1055
        %v1752 = vsel %vm1740, %v1719, %v1057
        %v1753 = vsel %vm1740, %v1720, %v1059
        %v1754 = vsel %vm1740, %v1721, %v1061
        %v1755 = vsel %vm1740, %v1722, %v1063
        %v1756 = vsel %vm1740, %v1723, %v1065
        %v1757 = vsel %vm1740, %v1724, %v1067
        %v1758 = vsel %vm1740, %v1725, %v1069
        %v1759 = vsel %vm1740, %v1726, %v1071
        %v1760 = vsel %vm1740, %v1727, %v1073
        %v1761 = vsel %vm1740, %v1728, %v1075
        %v1762 = vsel %vm1740, %v1729, %v1077
        %v1763 = vsel %vm1740, %v1730, %v1079
        %v1764 = vsel %vm1740, %v1731, %v1081
        %v1765 = vsel %vm1740, %v1732, %v1083
        %v1766 = vsel %vm1740, %v1733, %v1085
        %v1767 = vsel %vm1740, %v1734, %v1087
        %v1768 = vsel %vm1740, %v1735, %v1089
        %v1769 = vsel %vm1740, %v1736, %v1091
        %v1770 = vsel %vm1740, %v1737, %v1093
        %v1771 = vsel %vm1740, %v1738, %v1095
        %v1772 = vsel %vm1740, %v1739, %v1097
        %vm1773 = vcmask 162816
        %v1774 = vsel %vm1773, %v1741, %v1163
        %v1775 = vsel %vm1773, %v1742, %v1165
        %v1776 = vsel %vm1773, %v1743, %v1167
        %v1777 = vsel %vm1773, %v1744, %v1169
        %v1778 = vsel %vm1773, %v1745, %v1171
        %v1779 = vsel %vm1773, %v1746, %v1173
        %v1780 = vsel %vm1773, %v1747, %v1175
        %v1781 = vsel %vm1773, %v1748, %v1177
        %v1782 = vsel %vm1773, %v1749, %v1179
        %v1783 = vsel %vm1773, %v1750, %v1181
        %v1784 = vsel %vm1773, %v1751, %v1183
        %v1785 = vsel %vm1773, %v1752, %v1185
        %v1786 = vsel %vm1773, %v1753, %v1187
        %v1787 = vsel %vm1773, %v1754, %v1189
        %v1788 = vsel %vm1773, %v1755, %v1191
        %v1789 = vsel %vm1773, %v1756, %v1193
        %v1790 = vsel %vm1773, %v1757, %v1195
        %v1791 = vsel %vm1773, %v1758, %v1197
        %v1792 = vsel %vm1773, %v1759, %v1199
        %v1793 = vsel %vm1773, %v1760, %v1201
        %v1794 = vsel %vm1773, %v1761, %v1203
        %v1795 = vsel %vm1773, %v1762, %v1205
        %v1796 = vsel %vm1773, %v1763, %v1207
        %v1797 = vsel %vm1773, %v1764, %v1209
        %v1798 = vsel %vm1773, %v1765, %v1211
        %v1799 = vsel %vm1773, %v1766, %v1213
        %v1800 = vsel %vm1773, %v1767, %v1215
        %v1801 = vsel %vm1773, %v1768, %v1217
        %v1802 = vsel %vm1773, %v1769, %v1219
        %v1803 = vsel %vm1773, %v1770, %v1221
        %v1804 = vsel %vm1773, %v1771, %v1223
        %v1805 = vsel %vm1773, %v1772, %v1225
        %vm1806 = vcmask 195584
        %v1807 = vsel %vm1806, %v1774, %v1291
        %v1808 = vsel %vm1806, %v1775, %v1293
        %v1809 = vsel %vm1806, %v1776, %v1295
        %v1810 = vsel %vm1806, %v1777, %v1297
        %v1811 = vsel %vm1806, %v1778, %v1299
        %v1812 = vsel %vm1806, %v1779, %v1301
        %v1813 = vsel %vm1806, %v1780, %v1303
        %v1814 = vsel %vm1806, %v1781, %v1305
        %v1815 = vsel %vm1806, %v1782, %v1307
        %v1816 = vsel %vm1806, %v1783, %v1309
        %v1817 = vsel %vm1806, %v1784, %v1311
        %v1818 = vsel %vm1806, %v1785, %v1313
        %v1819 = vsel %vm1806, %v1786, %v1315
        %v1820 = vsel %vm1806, %v1787, %v1317
        %v1821 = vsel %vm1806, %v1788, %v1319
        %v1822 = vsel %vm1806, %v1789, %v1321
        %v1823 = vsel %vm1806, %v1790, %v1323
        %v1824 = vsel %vm1806, %v1791, %v1325
        %v1825 = vsel %vm1806, %v1792, %v1327
        %v1826 = vsel %vm1806, %v1793, %v1329
        %v1827 = vsel %vm1806, %v1794, %v1331
        %v1828 = vsel %vm1806, %v1795, %v1333
        %v1829 = vsel %vm1806, %v1796, %v1335
        %v1830 = vsel %vm1806, %v1797, %v1337
        %v1831 = vsel %vm1806, %v1798, %v1339
        %v1832 = vsel %vm1806, %v1799, %v1341
        %v1833 = vsel %vm1806, %v1800, %v1343
        %v1834 = vsel %vm1806, %v1801, %v1345
        %v1835 = vsel %vm1806, %v1802, %v1347
        %v1836 = vsel %vm1806, %v1803, %v1349
        %v1837 = vsel %vm1806, %v1804, %v1351
        %v1838 = vsel %vm1806, %v1805, %v1353
        %vm1839 = vcmask 228352
        %v1840 = vsel %vm1839, %v1807, %v1419
        %v1841 = vsel %vm1839, %v1808, %v1421
        %v1842 = vsel %vm1839, %v1809, %v1423
        %v1843 = vsel %vm1839, %v1810, %v1425
        %v1844 = vsel %vm1839, %v1811, %v1427
        %v1845 = vsel %vm1839, %v1812, %v1429
        %v1846 = vsel %vm1839, %v1813, %v1431
        %v1847 = vsel %vm1839, %v1814, %v1433
        %v1848 = vsel %vm1839, %v1815, %v1435
        %v1849 = vsel %vm1839, %v1816, %v1437
        %v1850 = vsel %vm1839, %v1817, %v1439
        %v1851 = vsel %vm1839, %v1818, %v1441
        %v1852 = vsel %vm1839, %v1819, %v1443
        %v1853 = vsel %vm1839, %v1820, %v1445
        %v1854 = vsel %vm1839, %v1821, %v1447
        %v1855 = vsel %vm1839, %v1822, %v1449
        %v1856 = vsel %vm1839, %v1823, %v1451
        %v1857 = vsel %vm1839, %v1824, %v1453
        %v1858 = vsel %vm1839, %v1825, %v1455
        %v1859 = vsel %vm1839, %v1826, %v1457
        %v1860 = vsel %vm1839, %v1827, %v1459
        %v1861 = vsel %vm1839, %v1828, %v1461
        %v1862 = vsel %vm1839, %v1829, %v1463
        %v1863 = vsel %vm1839, %v1830, %v1465
        %v1864 = vsel %vm1839, %v1831, %v1467
        %v1865 = vsel %vm1839, %v1832, %v1469
        %v1866 = vsel %vm1839, %v1833, %v1471
        %v1867 = vsel %vm1839, %v1834, %v1473
        %v1868 = vsel %vm1839, %v1835, %v1475
        %v1869 = vsel %vm1839, %v1836, %v1477
        %v1870 = vsel %vm1839, %v1837, %v1479
        %v1871 = vsel %vm1839, %v1838, %v1481
        %vm1872 = vcmask 261120
        %v1873 = vsel %vm1872, %v1840, %v1547
        %v1874 = vsel %vm1872, %v1841, %v1549
        %v1875 = vsel %vm1872, %v1842, %v1551
        %v1876 = vsel %vm1872, %v1843, %v1553
        %v1877 = vsel %vm1872, %v1844, %v1555
        %v1878 = vsel %vm1872, %v1845, %v1557
        %v1879 = vsel %vm1872, %v1846, %v1559
        %v1880 = vsel %vm1872, %v1847, %v1561
        %v1881 = vsel %vm1872, %v1848, %v1563
        %v1882 = vsel %vm1872, %v1849, %v1565
        %v1883 = vsel %vm1872, %v1850, %v1567
        %v1884 = vsel %vm1872, %v1851, %v1569
        %v1885 = vsel %vm1872, %v1852, %v1571
        %v1886 = vsel %vm1872, %v1853, %v1573
        %v1887 = vsel %vm1872, %v1854, %v1575
        %v1888 = vsel %vm1872, %v1855, %v1577
        %v1889 = vsel %vm1872, %v1856, %v1579
        %v1890 = vsel %vm1872, %v1857, %v1581
        %v1891 = vsel %vm1872, %v1858, %v1583
        %v1892 = vsel %vm1872, %v1859, %v1585
        %v1893 = vsel %vm1872, %v1860, %v1587
        %v1894 = vsel %vm1872, %v1861, %v1589
        %v1895 = vsel %vm1872, %v1862, %v1591
        %v1896 = vsel %vm1872, %v1863, %v1593
        %v1897 = vsel %vm1872, %v1864, %v1595
        %v1898 = vsel %vm1872, %v1865, %v1597
        %v1899 = vsel %vm1872, %v1866, %v1599
        %v1900 = vsel %vm1872, %v1867, %v1601
        %v1901 = vsel %vm1872, %v1868, %v1603
        %v1902 = vsel %vm1872, %v1869, %v1605
        %v1903 = vsel %vm1872, %v1870, %v1607
        %v1904 = vsel %vm1872, %v1871, %v1609
        %v1905 = vld [vmem:[%s1] sm:$0xff]
        %v1906 = vld [vmem:[%s1 + $0x8] sm:$0xff]
        %v1907 = vld [vmem:[%s1 + $0x10] sm:$0xff]
        %v1908 = vld [vmem:[%s1 + $0x18] sm:$0xff]
        %v1909 = vld [vmem:[%s1 + $0x20] sm:$0xf]
        %v1910 = vld [vmem:[%s2] sm:$0x1]
        %v1912 = vlaneseq
        %v1913 = vshrl.u32 %v1912, 7
        %v1914 = vsub.s32 0, %v1913
        %v1915 = vrot.slane %v1910, %v1914
        %vm1917 = vcmask 293888
        %v1919 = vsel %vm1917, %v1873, 0
        %v1922 = vsel %vm1917, %v1874, 0
        %v1925 = vsel %vm1917, %v1875, 0
        %v1928 = vsel %vm1917, %v1876, 0
        %v1931 = vsel %vm1917, %v1877, 0
        %v1934 = vsel %vm1917, %v1878, 0
        %v1937 = vsel %vm1917, %v1879, 0
        %v1940 = vsel %vm1917, %v1880, 0
        %v1943 = vsel %vm1917, %v1881, 0
        %v1946 = vsel %vm1917, %v1882, 0
        %v1949 = vsel %vm1917, %v1883, 0
        %v1952 = vsel %vm1917, %v1884, 0
        %v1955 = vsel %vm1917, %v1885, 0
        %v1958 = vsel %vm1917, %v1886, 0
        %v1961 = vsel %vm1917, %v1887, 0
        %v1964 = vsel %vm1917, %v1888, 0
        %v1967 = vsel %vm1917, %v1889, 0
        %v1970 = vsel %vm1917, %v1890, 0
        %v1973 = vsel %vm1917, %v1891, 0
        %v1976 = vsel %vm1917, %v1892, 0
        %v1979 = vsel %vm1917, %v1893, 0
        %v1982 = vsel %vm1917, %v1894, 0
        %v1985 = vsel %vm1917, %v1895, 0
        %v1988 = vsel %vm1917, %v1896, 0
        %v1991 = vsel %vm1917, %v1897, 0
        %v1994 = vsel %vm1917, %v1898, 0
        %v1997 = vsel %vm1917, %v1899, 0
        %v2000 = vsel %vm1917, %v1900, 0
        %v2003 = vsel %vm1917, %v1901, 0
        %v2006 = vsel %vm1917, %v1902, 0
        %v2009 = vsel %vm1917, %v1903, 0
        %v2012 = vsel %vm1917, %v1904, 0
        %vm2014 = vcmask 1043456
        %v2016 = vsel %vm2014, %v1909, 0
        %2018 = vmatprep.subr.mxu0 0.0
        %2019 = vmatpush1.msra.mxu0 %v1905
        %2020 = vmatprep.subr.mxu0 0.0
        %2021 = vmatpush1.msra.mxu0 %v1906
        %2022 = vmatprep.subr.mxu0 0.0
        %2023 = vmatpush1.msra.mxu0 %v1907
        %2024 = vmatprep.subr.mxu0 0.0
        %2025 = vmatpush1.msra.mxu0 %v1908
        %2026 = vmatprep.subr.mxu0 0.0
        %2027 = vmatpush1.msra.mxu0 %v2016
        %2028 = vmatprep.subr.mxu0 0.0
        %2029 = vmatpush1.msra.mxu0 0.0
        %2030 = vmatprep.subr.mxu0 0.0
        %2031 = vmatpush1.msra.mxu0 0.0
        %2032 = vmatprep.subr.mxu0 0.0
        %2033 = vmatpush1.msra.mxu0 0.0
        %2034 = vmatprep.subr.mxu0 0.0
        %2035 = vmatpush1.msra.mxu0 0.0
        %2036 = vmatprep.subr.mxu0 0.0
        %2037 = vmatpush1.msra.mxu0 0.0
        %2038 = vmatprep.subr.mxu0 0.0
        %2039 = vmatpush1.msra.mxu0 0.0
        %2040 = vmatprep.subr.mxu0 0.0
        %2041 = vmatpush1.msra.mxu0 0.0
        %2042 = vmatprep.subr.mxu0 0.0
        %2043 = vmatpush1.msra.mxu0 0.0
        %2044 = vmatprep.subr.mxu0 0.0
        %2045 = vmatpush1.msra.mxu0 0.0
        %2046 = vmatprep.subr.mxu0 0.0
        %2047 = vmatpush1.msra.mxu0 0.0
        %2048 = vmatprep.subr.mxu0 0.0
        %2049 = vmatpush1.msra.mxu0 0.0
        %2050 = vmatprep.subr.mxu0 0.0
        %2051 = vmatpush1.msra.mxu0 0.0
        %2052 = vmatprep.subr.mxu0 0.0
        %2053 = vmatpush1.msra.mxu0 0.0
        %2054 = vmatprep.subr.mxu0 0.0
        %2055 = vmatpush1.msra.mxu0 0.0
        %2056 = vmatprep.subr.mxu0 0.0
        %2057 = vmatpush1.msra.mxu0 0.0
        %2058 = vmatprep.subr.mxu0 0.0
        %2059 = vmatpush1.msra.mxu0 0.0
        %2060 = vmatprep.subr.mxu0 0.0
        %2061 = vmatpush1.msra.mxu0 0.0
        %2062 = vmatprep.subr.mxu0 0.0
        %2063 = vmatpush1.msra.mxu0 0.0
        %2064 = vmatprep.subr.mxu0 0.0
        %2065 = vmatpush1.msra.mxu0 0.0
        %2066 = vmatprep.subr.mxu0 0.0
        %2067 = vmatpush1.msra.mxu0 0.0
        %2068 = vmatprep.subr.mxu0 0.0
        %2069 = vmatpush1.msra.mxu0 0.0
        %2070 = vmatprep.subr.mxu0 0.0
        %2071 = vmatpush1.msra.mxu0 0.0
        %2072 = vmatprep.subr.mxu0 0.0
        %2073 = vmatpush1.msra.mxu0 0.0
        %2074 = vmatprep.subr.mxu0 0.0
        %2075 = vmatpush1.msra.mxu0 0.0
        %2076 = vmatprep.subr.mxu0 0.0
        %2077 = vmatpush1.msra.mxu0 0.0
        %2078 = vmatprep.subr.mxu0 0.0
        %2079 = vmatpush1.msra.mxu0 0.0
        %2080 = vmatprep.subr.mxu0 0.0
        %2081 = vmatpush1.msra.mxu0 0.0
        %2082 = vmatprep.mubr.f32.mxu0 0.0
        %2083 = vmatmul.mubr.f32.gmra.mrb[0].mxu0 %v1919
        %v2084 = vpop.f32.mrb[0].mxu0
        %v2085 = vadd.f32 %v1915, %v2084
        %v2086 = vpop.f32.mrb[0].mxu0
        %2087 = vmatprep.mubr.f32.mxu0 0.0
        %2088 = vmatmul.mubr.f32.gmra.mrb[0].mxu0 %v1922
        %v2089 = vpop.f32.mrb[0].mxu0
        %v2090 = vadd.f32 %v1915, %v2089
        %v2091 = vpop.f32.mrb[0].mxu0
        %2092 = vmatprep.mubr.f32.mxu0 0.0
        %2093 = vmatmul.mubr.f32.gmra.mrb[0].mxu0 %v1925
        %v2094 = vpop.f32.mrb[0].mxu0
        %v2095 = vadd.f32 %v1915, %v2094
        %v2096 = vpop.f32.mrb[0].mxu0
        %2097 = vmatprep.mubr.f32.mxu0 0.0
        %2098 = vmatmul.mubr.f32.gmra.mrb[0].mxu0 %v1928
        %v2099 = vpop.f32.mrb[0].mxu0
        %v2100 = vadd.f32 %v1915, %v2099
        %v2101 = vpop.f32.mrb[0].mxu0
        %2102 = vmatprep.mubr.f32.mxu0 0.0
        %2103 = vmatmul.mubr.f32.gmra.mrb[0].mxu0 %v1931
        %v2104 = vpop.f32.mrb[0].mxu0
        %v2105 = vadd.f32 %v1915, %v2104
        %v2106 = vpop.f32.mrb[0].mxu0
        %2107 = vmatprep.mubr.f32.mxu0 0.0
        %2108 = vmatmul.mubr.f32.gmra.mrb[0].mxu0 %v1934
        %v2109 = vpop.f32.mrb[0].mxu0
        %v2110 = vadd.f32 %v1915, %v2109
        %v2111 = vpop.f32.mrb[0].mxu0
        %2112 = vmatprep.mubr.f32.mxu0 0.0
        %2113 = vmatmul.mubr.f32.gmra.mrb[0].mxu0 %v1937
        %v2114 = vpop.f32.mrb[0].mxu0
        %v2115 = vadd.f32 %v1915, %v2114
        %v2116 = vpop.f32.mrb[0].mxu0
        %2117 = vmatprep.mubr.f32.mxu0 0.0
        %2118 = vmatmul.mubr.f32.gmra.mrb[0].mxu0 %v1940
        %v2119 = vpop.f32.mrb[0].mxu0
        %v2120 = vadd.f32 %v1915, %v2119
        %v2121 = vpop.f32.mrb[0].mxu0
        %2122 = vmatprep.mubr.f32.mxu0 0.0
        %2123 = vmatmul.mubr.f32.gmra.mrb[0].mxu0 %v1943
        %v2124 = vpop.f32.mrb[0].mxu0
        %v2125 = vadd.f32 %v1915, %v2124
        %v2126 = vpop.f32.mrb[0].mxu0
        %2127 = vmatprep.mubr.f32.mxu0 0.0
        %2128 = vmatmul.mubr.f32.gmra.mrb[0].mxu0 %v1946
        %v2129 = vpop.f32.mrb[0].mxu0
        %v2130 = vadd.f32 %v1915, %v2129
        %v2131 = vpop.f32.mrb[0].mxu0
        %2132 = vmatprep.mubr.f32.mxu0 0.0
        %2133 = vmatmul.mubr.f32.gmra.mrb[0].mxu0 %v1949
        %v2134 = vpop.f32.mrb[0].mxu0
        %v2135 = vadd.f32 %v1915, %v2134
        %v2136 = vpop.f32.mrb[0].mxu0
        %2137 = vmatprep.mubr.f32.mxu0 0.0
        %2138 = vmatmul.mubr.f32.gmra.mrb[0].mxu0 %v1952
        %v2139 = vpop.f32.mrb[0].mxu0
        %v2140 = vadd.f32 %v1915, %v2139
        %v2141 = vpop.f32.mrb[0].mxu0
        %2142 = vmatprep.mubr.f32.mxu0 0.0
        %2143 = vmatmul.mubr.f32.gmra.mrb[0].mxu0 %v1955
        %v2144 = vpop.f32.mrb[0].mxu0
        %v2145 = vadd.f32 %v1915, %v2144
        %v2146 = vpop.f32.mrb[0].mxu0
        %2147 = vmatprep.mubr.f32.mxu0 0.0
        %2148 = vmatmul.mubr.f32.gmra.mrb[0].mxu0 %v1958
        %v2149 = vpop.f32.mrb[0].mxu0
        %v2150 = vadd.f32 %v1915, %v2149
        %v2151 = vpop.f32.mrb[0].mxu0
        %2152 = vmatprep.mubr.f32.mxu0 0.0
        %2153 = vmatmul.mubr.f32.gmra.mrb[0].mxu0 %v1961
        %v2154 = vpop.f32.mrb[0].mxu0
        %v2155 = vadd.f32 %v1915, %v2154
        %v2156 = vpop.f32.mrb[0].mxu0
        %2157 = vmatprep.mubr.f32.mxu0 0.0
        %2158 = vmatmul.mubr.f32.gmra.mrb[0].mxu0 %v1964
        %v2159 = vpop.f32.mrb[0].mxu0
        %v2160 = vadd.f32 %v1915, %v2159
        %v2161 = vpop.f32.mrb[0].mxu0
        %2162 = vmatprep.mubr.f32.mxu0 0.0
        %2163 = vmatmul.mubr.f32.gmra.mrb[0].mxu0 %v1967
        %v2164 = vpop.f32.mrb[0].mxu0
        %v2165 = vadd.f32 %v1915, %v2164
        %v2166 = vpop.f32.mrb[0].mxu0
        %2167 = vmatprep.mubr.f32.mxu0 0.0
        %2168 = vmatmul.mubr.f32.gmra.mrb[0].mxu0 %v1970
        %v2169 = vpop.f32.mrb[0].mxu0
        %v2170 = vadd.f32 %v1915, %v2169
        %v2171 = vpop.f32.mrb[0].mxu0
        %2172 = vmatprep.mubr.f32.mxu0 0.0
        %2173 = vmatmul.mubr.f32.gmra.mrb[0].mxu0 %v1973
        %v2174 = vpop.f32.mrb[0].mxu0
        %v2175 = vadd.f32 %v1915, %v2174
        %v2176 = vpop.f32.mrb[0].mxu0
        %2177 = vmatprep.mubr.f32.mxu0 0.0
        %2178 = vmatmul.mubr.f32.gmra.mrb[0].mxu0 %v1976
        %v2179 = vpop.f32.mrb[0].mxu0
        %v2180 = vadd.f32 %v1915, %v2179
        %v2181 = vpop.f32.mrb[0].mxu0
        %2182 = vmatprep.mubr.f32.mxu0 0.0
        %2183 = vmatmul.mubr.f32.gmra.mrb[0].mxu0 %v1979
        %v2184 = vpop.f32.mrb[0].mxu0
        %v2185 = vadd.f32 %v1915, %v2184
        %v2186 = vpop.f32.mrb[0].mxu0
        %2187 = vmatprep.mubr.f32.mxu0 0.0
        %2188 = vmatmul.mubr.f32.gmra.mrb[0].mxu0 %v1982
        %v2189 = vpop.f32.mrb[0].mxu0
        %v2190 = vadd.f32 %v1915, %v2189
        %v2191 = vpop.f32.mrb[0].mxu0
        %2192 = vmatprep.mubr.f32.mxu0 0.0
        %2193 = vmatmul.mubr.f32.gmra.mrb[0].mxu0 %v1985
        %v2194 = vpop.f32.mrb[0].mxu0
        %v2195 = vadd.f32 %v1915, %v2194
        %v2196 = vpop.f32.mrb[0].mxu0
        %2197 = vmatprep.mubr.f32.mxu0 0.0
        %2198 = vmatmul.mubr.f32.gmra.mrb[0].mxu0 %v1988
        %v2199 = vpop.f32.mrb[0].mxu0
        %v2200 = vadd.f32 %v1915, %v2199
        %v2201 = vpop.f32.mrb[0].mxu0
        %2202 = vmatprep.mubr.f32.mxu0 0.0
        %2203 = vmatmul.mubr.f32.gmra.mrb[0].mxu0 %v1991
        %v2204 = vpop.f32.mrb[0].mxu0
        %v2205 = vadd.f32 %v1915, %v2204
        %v2206 = vpop.f32.mrb[0].mxu0
        %2207 = vmatprep.mubr.f32.mxu0 0.0
        %2208 = vmatmul.mubr.f32.gmra.mrb[0].mxu0 %v1994
        %v2209 = vpop.f32.mrb[0].mxu0
        %v2210 = vadd.f32 %v1915, %v2209
        %v2211 = vpop.f32.mrb[0].mxu0
        %2212 = vmatprep.mubr.f32.mxu0 0.0
        %2213 = vmatmul.mubr.f32.gmra.mrb[0].mxu0 %v1997
        %v2214 = vpop.f32.mrb[0].mxu0
        %v2215 = vadd.f32 %v1915, %v2214
        %v2216 = vpop.f32.mrb[0].mxu0
        %2217 = vmatprep.mubr.f32.mxu0 0.0
        %2218 = vmatmul.mubr.f32.gmra.mrb[0].mxu0 %v2000
        %v2219 = vpop.f32.mrb[0].mxu0
        %v2220 = vadd.f32 %v1915, %v2219
        %v2221 = vpop.f32.mrb[0].mxu0
        %2222 = vmatprep.mubr.f32.mxu0 0.0
        %2223 = vmatmul.mubr.f32.gmra.mrb[0].mxu0 %v2003
        %v2224 = vpop.f32.mrb[0].mxu0
        %v2225 = vadd.f32 %v1915, %v2224
        %v2226 = vpop.f32.mrb[0].mxu0
        %2227 = vmatprep.mubr.f32.mxu0 0.0
        %2228 = vmatmul.mubr.f32.gmra.mrb[0].mxu0 %v2006
        %v2229 = vpop.f32.mrb[0].mxu0
        %v2230 = vadd.f32 %v1915, %v2229
        %v2231 = vpop.f32.mrb[0].mxu0
        %2232 = vmatprep.mubr.f32.mxu0 0.0
        %2233 = vmatmul.mubr.f32.gmra.mrb[0].mxu0 %v2009
        %v2234 = vpop.f32.mrb[0].mxu0
        %v2235 = vadd.f32 %v1915, %v2234
        %v2236 = vpop.f32.mrb[0].mxu0
        %2237 = vmatprep.mubr.f32.mxu0 0.0
        %2238 = vmatmul.mubr.f32.gmra.mrb[0].mxu0 %v2012
        %v2239 = vpop.f32.mrb[0].mxu0
        %v2240 = vadd.f32 %v1915, %v2239
        %v2241 = vpop.f32.mrb[0].mxu0
        %2242 = vdwg.mxu0
        %2243 = vst [vmem:[%s194] sm:$0xff] %v2085
        %2244 = vst [vmem:[%s194 + $0x8] sm:$0xff] %v2090
        %2245 = vst [vmem:[%s194 + $0x10] sm:$0xff] %v2095
        %2246 = vst [vmem:[%s194 + $0x18] sm:$0xff] %v2100
        %2247 = vst [vmem:[%s194 + $0x20] sm:$0xff] %v2105
        %2248 = vst [vmem:[%s194 + $0x28] sm:$0xff] %v2110
        %2249 = vst [vmem:[%s194 + $0x30] sm:$0xff] %v2115
        %2250 = vst [vmem:[%s194 + $0x38] sm:$0xff] %v2120
        %2251 = vst [vmem:[%s194 + $0x40] sm:$0xff] %v2125
        %2252 = vst [vmem:[%s194 + $0x48] sm:$0xff] %v2130
        %2253 = vst [vmem:[%s194 + $0x50] sm:$0xff] %v2135
        %2254 = vst [vmem:[%s194 + $0x58] sm:$0xff] %v2140
        %2255 = vst [vmem:[%s194 + $0x60] sm:$0xff] %v2145
        %2256 = vst [vmem:[%s194 + $0x68] sm:$0xff] %v2150
        %2257 = vst [vmem:[%s194 + $0x70] sm:$0xff] %v2155
        %2258 = vst [vmem:[%s194 + $0x78] sm:$0xff] %v2160
        %2259 = vst [vmem:[%s194 + $0x80] sm:$0xff] %v2165
        %2260 = vst [vmem:[%s194 + $0x88] sm:$0xff] %v2170
        %2261 = vst [vmem:[%s194 + $0x90] sm:$0xff] %v2175
        %2262 = vst [vmem:[%s194 + $0x98] sm:$0xff] %v2180
        %2263 = vst [vmem:[%s194 + $0xa0] sm:$0xff] %v2185
        %2264 = vst [vmem:[%s194 + $0xa8] sm:$0xff] %v2190
        %2265 = vst [vmem:[%s194 + $0xb0] sm:$0xff] %v2195
        %2266 = vst [vmem:[%s194 + $0xb8] sm:$0xff] %v2200
        %2267 = vst [vmem:[%s194 + $0xc0] sm:$0xff] %v2205
        %2268 = vst [vmem:[%s194 + $0xc8] sm:$0xff] %v2210
        %2269 = vst [vmem:[%s194 + $0xd0] sm:$0xff] %v2215
        %2270 = vst [vmem:[%s194 + $0xd8] sm:$0xff] %v2220
        %2271 = vst [vmem:[%s194 + $0xe0] sm:$0xff] %v2225
        %2272 = vst [vmem:[%s194 + $0xe8] sm:$0xff] %v2230
        %2273 = vst [vmem:[%s194 + $0xf0] sm:$0xff] %v2235
        %2274 = vst [vmem:[%s194 + $0xf8] sm:$0xff] %v2240
        %v2275 = vadd.f32 %v2085, %v2090
        %v2276 = vadd.f32 %v2275, %v2095
        %v2277 = vadd.f32 %v2276, %v2100
        %v2278 = vadd.f32 %v2277, %v2105
        %v2279 = vadd.f32 %v2278, %v2110
        %v2280 = vadd.f32 %v2279, %v2115
        %v2281 = vadd.f32 %v2280, %v2120
        %v2282 = vadd.f32 %v2281, %v2125
        %v2283 = vadd.f32 %v2282, %v2130
        %v2284 = vadd.f32 %v2283, %v2135
        %v2285 = vadd.f32 %v2284, %v2140
        %v2286 = vadd.f32 %v2285, %v2145
        %v2287 = vadd.f32 %v2286, %v2150
        %v2288 = vadd.f32 %v2287, %v2155
        %v2289 = vadd.f32 %v2288, %v2160
        %v2290 = vadd.f32 %v2289, %v2165
        %v2291 = vadd.f32 %v2290, %v2170
        %v2292 = vadd.f32 %v2291, %v2175
        %v2293 = vadd.f32 %v2292, %v2180
        %v2294 = vadd.f32 %v2293, %v2185
        %v2295 = vadd.f32 %v2294, %v2190
        %v2296 = vadd.f32 %v2295, %v2195
        %v2297 = vadd.f32 %v2296, %v2200
        %v2298 = vadd.f32 %v2297, %v2205
        %v2299 = vadd.f32 %v2298, %v2210
        %v2300 = vadd.f32 %v2299, %v2215
        %v2301 = vadd.f32 %v2300, %v2220
        %v2302 = vadd.f32 %v2301, %v2225
        %v2303 = vadd.f32 %v2302, %v2230
        %v2304 = vadd.f32 %v2303, %v2235
        %v2305 = vadd.f32 %v2304, %v2240
        %v2306 = vrot.slane %v2305, 4
        %v2307 = vadd.f32 %v2305, %v2306
        %v2308 = vrot.slane %v2307, 2
        %v2309 = vadd.f32 %v2307, %v2308
        %v2310 = vrot.slane %v2309, 1
        %v2311 = vadd.f32 %v2309, %v2310
        %v2312 = vmul.f32 %v2085, %v2085
        %v2313 = vmul.f32 %v2090, %v2090
        %v2314 = vmul.f32 %v2095, %v2095
        %v2315 = vmul.f32 %v2100, %v2100
        %v2316 = vmul.f32 %v2105, %v2105
        %v2317 = vmul.f32 %v2110, %v2110
        %v2318 = vmul.f32 %v2115, %v2115
        %v2319 = vmul.f32 %v2120, %v2120
        %v2320 = vmul.f32 %v2125, %v2125
        %v2321 = vmul.f32 %v2130, %v2130
        %v2322 = vmul.f32 %v2135, %v2135
        %v2323 = vmul.f32 %v2140, %v2140
        %v2324 = vmul.f32 %v2145, %v2145
        %v2325 = vmul.f32 %v2150, %v2150
        %v2326 = vmul.f32 %v2155, %v2155
        %v2327 = vmul.f32 %v2160, %v2160
        %v2328 = vmul.f32 %v2165, %v2165
        %v2329 = vmul.f32 %v2170, %v2170
        %v2330 = vmul.f32 %v2175, %v2175
        %v2331 = vmul.f32 %v2180, %v2180
        %v2332 = vmul.f32 %v2185, %v2185
        %v2333 = vmul.f32 %v2190, %v2190
        %v2334 = vmul.f32 %v2195, %v2195
        %v2335 = vmul.f32 %v2200, %v2200
        %v2336 = vmul.f32 %v2205, %v2205
        %v2337 = vmul.f32 %v2210, %v2210
        %v2338 = vmul.f32 %v2215, %v2215
        %v2339 = vmul.f32 %v2220, %v2220
        %v2340 = vmul.f32 %v2225, %v2225
        %v2341 = vmul.f32 %v2230, %v2230
        %v2342 = vmul.f32 %v2235, %v2235
        %v2343 = vmul.f32 %v2240, %v2240
        %v2344 = vadd.f32 %v2312, %v2313
        %v2345 = vadd.f32 %v2344, %v2314
        %v2346 = vadd.f32 %v2345, %v2315
        %v2347 = vadd.f32 %v2346, %v2316
        %v2348 = vadd.f32 %v2347, %v2317
        %v2349 = vadd.f32 %v2348, %v2318
        %v2350 = vadd.f32 %v2349, %v2319
        %v2351 = vadd.f32 %v2350, %v2320
        %v2352 = vadd.f32 %v2351, %v2321
        %v2353 = vadd.f32 %v2352, %v2322
        %v2354 = vadd.f32 %v2353, %v2323
        %v2355 = vadd.f32 %v2354, %v2324
        %v2356 = vadd.f32 %v2355, %v2325
        %v2357 = vadd.f32 %v2356, %v2326
        %v2358 = vadd.f32 %v2357, %v2327
        %v2359 = vadd.f32 %v2358, %v2328
        %v2360 = vadd.f32 %v2359, %v2329
        %v2361 = vadd.f32 %v2360, %v2330
        %v2362 = vadd.f32 %v2361, %v2331
        %v2363 = vadd.f32 %v2362, %v2332
        %v2364 = vadd.f32 %v2363, %v2333
        %v2365 = vadd.f32 %v2364, %v2334
        %v2366 = vadd.f32 %v2365, %v2335
        %v2367 = vadd.f32 %v2366, %v2336
        %v2368 = vadd.f32 %v2367, %v2337
        %v2369 = vadd.f32 %v2368, %v2338
        %v2370 = vadd.f32 %v2369, %v2339
        %v2371 = vadd.f32 %v2370, %v2340
        %v2372 = vadd.f32 %v2371, %v2341
        %v2373 = vadd.f32 %v2372, %v2342
        %v2374 = vadd.f32 %v2373, %v2343
        %v2375 = vrot.slane %v2374, 4
        %v2376 = vadd.f32 %v2374, %v2375
        %v2377 = vrot.slane %v2376, 2
        %v2378 = vadd.f32 %v2376, %v2377
        %v2379 = vrot.slane %v2378, 1
        %v2380 = vadd.f32 %v2378, %v2379
        %vm2381 = vcmask 1040384
        %v2382 = vsel %vm2381, %v2311, %v2380
        %2383 = vst [vmem:[%s201] sm:$0x3] %v2382
        %s2384 = sand.u32 %s98, 1
        %s2385 = scalar_lea.sflag [#allocation4], %s2384
        %s2386 = sand.u32 %s98, 1
        %s2387 = smul.addr %s2386, 256
        %s2388 = scalar_lea.vmem [#allocation3], %s2387
        %s2389 = sand.u32 %s124, 1
        %s2390 = scalar_lea.sflag [#allocation6], %s2389
        %s2391 = sand.u32 %s124, 1
        %s2392 = smul.addr %s2391, 2
        %s2393 = scalar_lea.vmem [#allocation5], %s2392
        // Predicated region
        $region33: #{tpu_custom_call.1} parent=31 // pred_check
          %p2394 = pneg %p108
        $region34: #{tpu_custom_call.1} parent=31 // pred_check_branch
          %2396 = sbr.rel (%p2394) target = $region36
        $region35: #{tpu_custom_call.1} parent=31 // pred_region
          %s2397 = smul.u32 32, %s22
          %s2399 = ssub.s32 4096, 4096
          %2400 = vsyncadd %s2385, %s2399
          %s2401 = smul.addr %s2397, 128
          %s2402 = scalar_lea.hbm %s3, %s2401
          %s2403 = sshll.u32 %s2388, 4
          %s2404 = int_to_ptr.vmem [resolvable:$true] %s2403
          %2409 = dma.vmem_to_hbm [thread:$0]  %s2404, 4096, %s2402, %s2385, 128, 128, 8
        $region36: #{tpu_custom_call.1} parent=31 // pred_fallthru
          _
        // Predicated region
        $region37: #{tpu_custom_call.1} parent=31 // pred_check
          %p2410 = pneg %p134
        $region38: #{tpu_custom_call.1} parent=31 // pred_check_branch
          %2412 = sbr.rel (%p2410) target = $region40
        $region39: #{tpu_custom_call.1} parent=31 // pred_region
          %s2414 = ssub.s32 32, 32
          %2415 = vsyncadd %s2390, %s2414
          %s2416 = smul.addr %s22, 32
          %s2417 = scalar_lea.hbm %s4, %s2416
          %s2419 = sshll.u32 %s2393, 4
          %s2420 = int_to_ptr.vmem [resolvable:$true] %s2419
          %2422 = dma.vmem_to_hbm [thread:$0]  %s2420, 32, %s2417, %s2390
        $region40: #{tpu_custom_call.1} parent=31 // pred_fallthru
          _
      $region32: #{tpu_custom_call.1} parent=5 // pred_fallthru
        _
      %p2423 = scmp.le.s32.totalorder 2, %s17
      // Predicated region
      $region41: #{tpu_custom_call.1} parent=5 // pred_check
        %p2424 = pneg %p2423
      $region42: #{tpu_custom_call.1} parent=5 // pred_check_branch
        %2426 = sbr.rel (%p2424) target = $region44
      $region43: #{tpu_custom_call.1} parent=5 // pred_region
        %s2427 = ssub.s32 %s17, 2
        // Predicated region
        $region45: #{tpu_custom_call.1} parent=43 // pred_check
          %p2428 = pneg %p114
        $region46: #{tpu_custom_call.1} parent=43 // pred_check_branch
          %2430 = sbr.rel (%p2428) target = $region48
        $region47: #{tpu_custom_call.1} parent=43 // pred_region
          %s2431 = sand.u32 %s99, 1
          %s2432 = scalar_lea.sflag [#allocation4], %s2431
          %s2433 = sand.u32 %s99, 1
          %s2434 = smul.addr %s2433, 256
          %s2435 = scalar_lea.vmem [#allocation3], %s2434
          %2436 = dma.done %s2432, 4096
        $region48: #{tpu_custom_call.1} parent=43 // pred_fallthru
          _
        // Predicated region
        $region49: #{tpu_custom_call.1} parent=43 // pred_check
          %p2437 = pneg %p140
        $region50: #{tpu_custom_call.1} parent=43 // pred_check_branch
          %2439 = sbr.rel (%p2437) target = $region52
        $region51: #{tpu_custom_call.1} parent=43 // pred_region
          %s2440 = sand.u32 %s125, 1
          %s2441 = scalar_lea.sflag [#allocation6], %s2440
          %s2442 = sand.u32 %s125, 1
          %s2443 = smul.addr %s2442, 2
          %s2444 = scalar_lea.vmem [#allocation5], %s2443
          %2445 = dma.done %s2441, 32
        $region52: #{tpu_custom_call.1} parent=43 // pred_fallthru
          _
      $region44: #{tpu_custom_call.1} parent=5 // pred_fallthru
        _
    $region6: #{tpu_custom_call.1} parent=1 // loop_footer
      %s21 = sadd.s32 1, %s17
    $region7: #{tpu_custom_call.1} parent=1 // loop_footer_branch
      %16 = sbr.rel target = $region3
    $region8: #{tpu_custom_call.1} parent=1 // loop_exit
      _
    %2446 = vsyncpa [#allocation4], 1
    %s2447 = scalar_lea.sflag [#allocation4], 1
    %2448 = vsyncpa %s2447, 1
    %2449 = vsyncpa [#allocation6], 1
    %s2450 = scalar_lea.sflag [#allocation6], 1
    %2451 = vsyncpa %s2450, 1

</llo_original>
